<compile_context>
chip_gen: v7x
topology: tpu7x:2x2x1
jax: 0.10.0
libtpu: 0.0.40
codegen_flags: <defaults>
</compile_context>

<pallas_src>
import jax
import jax.numpy as jnp
from jax.experimental import pallas as pl
from jax.experimental.pallas import tpu as pltpu

LANE = 128     # lane-axis (last dim) granularity
SUBLANE = 8    # sublane granularity for f32


def _round_up(x, m):
    return ((x + m - 1) // m) * m


def _vmem_capacity_bytes():
    try:
        return int(pltpu.get_tpu_info().vmem_capacity_bytes)
    except Exception:
        return 64 << 20          # conservative fallback: assume v7x (64 MiB per core)


def _device_kind():
    try:
        return jax.devices()[0].device_kind.lower()
    except Exception:
        return ""


def _feature_granule():
    # v6e/v7x MXUs are 256x256 -> prefer 256-aligned feature dims when the dim already
    # exceeds one 128-lane tile; v5e's 4x128^2 MXU only needs 128.
    kind = _device_kind()
    return 256 if ("v6" in kind or "v7" in kind) else 128


def _pad_dim(d, granule):
    g = granule if d > LANE else LANE
    return _round_up(d, g)


def _pick_batch_tile(n, requested):
    """128/256-aligned batch tile (MXU M fill); large batches get >=4 grid steps so the
    x/out DMAs pipeline and the 'parallel' axis feeds both v7x TensorCores."""
    n8 = _round_up(n, SUBLANE)
    if n8 <= 256:
        return n8 if n8 < 64 else _round_up(n8, LANE)    # single tile
    granule = 256
    steps_target = 4
    bt = min(_round_up(requested, granule),
             granule * max(1, _round_up(n, granule) // (steps_target * granule)))
    return max(granule, bt)


def mlp3_kernel(x_ref, w1_ref, b1_ref, w2_ref, b2_ref, w3_ref, b3_ref, o_ref):
    # Whole hot path (3 matmuls + bias + ReLU) runs on the MXU/VPU out of VMEM.
    # Matmuls accumulate in f32; bias-add / ReLU epilogues stay in f32 (VPU).
    x = x_ref[...]
    h1 = jnp.dot(x, w1_ref[...], preferred_element_type=jnp.float32) + b1_ref[...]
    h1 = jnp.maximum(h1, 0.0).astype(w2_ref.dtype)        # .clamp(min=0)
    h2 = jnp.dot(h1, w2_ref[...], preferred_element_type=jnp.float32) + b2_ref[...]
    h2 = jnp.maximum(h2, 0.0).astype(w3_ref.dtype)        # .clamp(min=0)
    y = jnp.dot(h2, w3_ref[...], preferred_element_type=jnp.float32) + b3_ref[...]
    o_ref[...] = y.astype(o_ref.dtype)


def three_layer_net(x, w1, b1, w2, b2, w3, b3, *,
                    batch_tile=512, use_bf16=True, out_dtype=None):
    N, D_in = x.shape
    H1 = w1.shape[1]
    H2 = w2.shape[1]
    D_out = w3.shape[1]
    f32 = jnp.float32
    mm_dtype = jnp.bfloat16 if use_bf16 else f32           # MXU operand dtype
    out_dtype = x.dtype if out_dtype is None else out_dtype

    # --- Feature dims padded to full MXU tiles (exact: padded cols hit zero weights). ---
    gran = _feature_granule()
    Dp = _pad_dim(D_in, gran)
    H1p = _pad_dim(H1, gran)
    H2p = _pad_dim(H2, gran)
    Dop = _pad_dim(D_out, gran)

    isz_mm = jnp.dtype(mm_dtype).itemsize
    isz_out = jnp.dtype(out_dtype).itemsize

    def vmem_need(bt, weight_bufs):
        tile_bytes = 2 * bt * Dp * isz_mm + 2 * bt * Dop * isz_out   # double-buffered x / out
        weight_bytes = weight_bufs * isz_mm * (Dp * H1p + H1p * H2p + H2p * Dop)
        bias_bytes = weight_bufs * 4 * (H1p + H2p + Dop)
        act_bytes = 4 * bt * (H1p + H2p)                              # f32 h1 / h2 intermediates
        return int(1.25 * (tile_bytes + weight_bytes + bias_bytes + act_bytes)) + (2 << 20)

    cap = int(0.75 * _vmem_capacity_bytes())   # ~48 MiB on v7x, ~96 MiB on v5e/v6e

    # --- Batch tile: MXU-aligned, shrunk adaptively if the footprint exceeds the cap. ---
    bt = _pick_batch_tile(N, batch_tile)
    while vmem_need(bt, 1) > cap and bt > LANE:
        bt = max(LANE, _round_up(bt // 2, LANE))
    if vmem_need(bt, 1) > cap:
        # TODO(synk): for weight sets that outgrow VMEM even with bf16 + single-buffered
        # weights, stream W1/W2/W3 panels over an inner "arbitrary" grid axis with an
        # f32 VMEM accumulator (pl.when init/finalize) instead of whole-matrix loads.
        raise NotImplementedError(
            "ThreeLayerNet weights do not fit the per-core VMEM budget; "
            "hidden-dim streaming is not implemented.")

    Np = _round_up(N, bt)                      # ragged batch handled by zero padding
    grid = (Np // bt,)

    def pad2(a, rows, cols, dt):
        a = a.astype(dt)
        return jnp.pad(a, ((0, rows - a.shape[0]), (0, cols - a.shape[1])))

    xp = pad2(x, Np, Dp, mm_dtype)
    w1p = pad2(w1, Dp, H1p, mm_dtype)
    w2p = pad2(w2, H1p, H2p, mm_dtype)
    w3p = pad2(w3, H2p, Dop, mm_dtype)
    b1p = pad2(b1.reshape(1, -1), 1, H1p, f32)   # biases stay f32 (VPU epilogue)
    b2p = pad2(b2.reshape(1, -1), 1, H2p, f32)
    b3p = pad2(b3.reshape(1, -1), 1, Dop, f32)

    flops = 2 * Np * (Dp * H1p + H1p * H2p + H2p * Dop)
    bytes_accessed = (xp.size * isz_mm
                      + (w1p.size + w2p.size + w3p.size) * isz_mm
                      + (H1p + H2p + Dop) * 4
                      + Np * Dop * isz_out)

    def run(single_buffer_weights):
        if single_buffer_weights:
            # Block-invariant inputs (constant index_map): one buffer is enough,
            # halving the dominant VMEM cost with zero bandwidth penalty.
            inv = dict(pipeline_mode=pl.Buffered(1))
            wb = 1
        else:
            inv = {}
            wb = 2

        # TODO(synk): if profiling shows exposed DMA on the x tile (small hidden dims),
        # bump only the x BlockSpec to pipeline_mode=pl.Buffered(3).
        in_specs = [
            pl.BlockSpec((bt, Dp), lambda i: (i, 0)),            # x tile (pipelined)
            pl.BlockSpec((Dp, H1p), lambda i: (0, 0), **inv),    # W1
            pl.BlockSpec((1, H1p), lambda i: (0, 0), **inv),     # b1
            pl.BlockSpec((H1p, H2p), lambda i: (0, 0), **inv),   # W2
            pl.BlockSpec((1, H2p), lambda i: (0, 0), **inv),     # b2
            pl.BlockSpec((H2p, Dop), lambda i: (0, 0), **inv),   # W3
            pl.BlockSpec((1, Dop), lambda i: (0, 0), **inv),     # b3
        ]
        out_spec = pl.BlockSpec((bt, Dop), lambda i: (i, 0))

        vmem_limit = int(min(max(vmem_need(bt, wb), 16 << 20), cap))

        return pl.pallas_call(
            mlp3_kernel,
            out_shape=jax.ShapeDtypeStruct((Np, Dop), out_dtype),
            grid_spec=pltpu.PrefetchScalarGridSpec(
                num_scalar_prefetch=0,
                grid=grid,
                in_specs=in_specs,
                out_specs=out_spec,
            ),
            compiler_params=pltpu.CompilerParams(
                dimension_semantics=("parallel",),
                vmem_limit_bytes=vmem_limit,
            ),
            cost_estimate=pl.CostEstimate(
                flops=flops, transcendentals=0, bytes_accessed=bytes_accessed),
        )(xp, w1p, b1p, w2p, b2p, w3p, b3p)

    try:
        out_padded = run(single_buffer_weights=True)
    except Exception:
        # Fallback for Pallas builds that reject pipeline_mode on these specs:
        # default double-buffered weight DMA (correct, just more VMEM).
        out_padded = run(single_buffer_weights=False)

    # Slice away batch / output-lane padding.
    return out_padded[:N, :D_out]


def reference(x, w1, b1, w2, b2, w3, b3):
    h1 = jnp.maximum(x @ w1 + b1, 0.0)
    h2 = jnp.maximum(h1 @ w2 + b2, 0.0)
    return h2 @ w3 + b3


if __name__ == "__main__":
    # Small, slightly ragged shapes consistent with ThreeLayerNet(D_in, H1, H2, D_out);
    # N large enough that the batch axis tiles into several grid steps.
    N, D_in, H1, H2, D_out = 1000, 48, 64, 40, 24

    key = jax.random.PRNGKey(0)
    kx, k1, k2, k3, kb1, kb2, kb3 = jax.random.split(key, 7)

    x = jax.random.normal(kx, (N, D_in), dtype=jnp.float32)

    # Deterministic init mimicking nn.Linear's uniform(-1/sqrt(fan_in), 1/sqrt(fan_in)).
    def init_linear(kw, kb, fan_in, fan_out):
        bound = 1.0 / jnp.sqrt(jnp.float32(fan_in))
        w = jax.random.uniform(kw, (fan_in, fan_out), jnp.float32, -bound, bound)
        b = jax.random.uniform(kb, (1, fan_out), jnp.float32, -bound, bound)
        return w, b

    w1, b1 = init_linear(k1, kb1, D_in, H1)
    w2, b2 = init_linear(k2, kb2, H1, H2)
    w3, b3 = init_linear(k3, kb3, H2, D_out)

    y_ref = reference(x, w1, b1, w2, b2, w3, b3)

    # Bit-exact path: f32 MXU operands, must match the f32 reference tightly.
    y_f32 = jax.block_until_ready(
        three_layer_net(x, w1, b1, w2, b2, w3, b3, use_bf16=False))
    assert y_f32.shape == (N, D_out)
    assert jnp.allclose(y_f32, y_ref, atol=1e-5, rtol=1e-5)

    # Default fast path: bf16 MXU operands with f32 accumulation / f32 epilogue.
    y_bf16 = jax.block_until_ready(three_layer_net(x, w1, b1, w2, b2, w3, b3))
    assert y_bf16.shape == (N, D_out)
    assert jnp.allclose(y_bf16, y_ref, atol=5e-2, rtol=5e-2)

    print("KERNEL_OK")
</pallas_src>

<mosaic_0001>
module attributes {stable_mosaic.version = 11 : i64} {
  func.func @mlp3_kernel(%arg0: i32, %arg1: memref<256x128xf32, #tpu.memory_space<vmem>>, %arg2: memref<128x128xf32, #tpu.memory_space<vmem>>, %arg3: memref<1x128xf32, #tpu.memory_space<vmem>>, %arg4: memref<128x128xf32, #tpu.memory_space<vmem>>, %arg5: memref<1x128xf32, #tpu.memory_space<vmem>>, %arg6: memref<128x128xf32, #tpu.memory_space<vmem>>, %arg7: memref<1x128xf32, #tpu.memory_space<vmem>>, %arg8: memref<256x128xf32, #tpu.memory_space<vmem>>) attributes {dimension_semantics = [#tpu.dimension_semantics<parallel>], iteration_bounds = array<i64: 4>, scalar_prefetch = 0 : i64, scratch_operands = 0 : i64, tpu.core_type = #tpu.core_type<tc>, window_params = [{transform_indices = @transform_0, window_bounds = array<i64: 256, 128>}, {pipeline_mode = #tpu.pipeline_mode<synchronous>, transform_indices = @transform_1, window_bounds = array<i64: 128, 128>}, {pipeline_mode = #tpu.pipeline_mode<synchronous>, transform_indices = @transform_2, window_bounds = array<i64: 1, 128>}, {pipeline_mode = #tpu.pipeline_mode<synchronous>, transform_indices = @transform_3, window_bounds = array<i64: 128, 128>}, {pipeline_mode = #tpu.pipeline_mode<synchronous>, transform_indices = @transform_4, window_bounds = array<i64: 1, 128>}, {pipeline_mode = #tpu.pipeline_mode<synchronous>, transform_indices = @transform_5, window_bounds = array<i64: 128, 128>}, {pipeline_mode = #tpu.pipeline_mode<synchronous>, transform_indices = @transform_6, window_bounds = array<i64: 1, 128>}, {transform_indices = @transform_7, window_bounds = array<i64: 256, 128>}]} {
    %c0 = arith.constant 0 : index
    %c0_0 = arith.constant 0 : index
    %0 = vector.load %arg1[%c0, %c0_0] : memref<256x128xf32, #tpu.memory_space<vmem>>, vector<256x128xf32>
    %c0_1 = arith.constant 0 : index
    %c0_2 = arith.constant 0 : index
    %1 = vector.load %arg2[%c0_1, %c0_2] : memref<128x128xf32, #tpu.memory_space<vmem>>, vector<128x128xf32>
    %cst = arith.constant dense<0.000000e+00> : vector<256x128xf32>
    %2 = tpu.matmul %0, %1, %cst {dimension_numbers = #tpu.dot_dimension_numbers<[1], [0], [0], [1], [0, 0, 1, 1], [], []>} : vector<256x128xf32>, vector<128x128xf32>, vector<256x128xf32> -> vector<256x128xf32>
    %c0_3 = arith.constant 0 : index
    %c0_4 = arith.constant 0 : index
    %3 = vector.load %arg3[%c0_3, %c0_4] : memref<1x128xf32, #tpu.memory_space<vmem>>, vector<1x128xf32>
    %4 = vector.broadcast %3 : vector<1x128xf32> to vector<256x128xf32>
    %5 = arith.addf %2, %4 : vector<256x128xf32>
    %cst_5 = arith.constant 0.000000e+00 : f32
    %6 = vector.broadcast %cst_5 : f32 to vector<256x128xf32>
    %7 = arith.maximumf %5, %6 : vector<256x128xf32>
    %c0_6 = arith.constant 0 : index
    %c0_7 = arith.constant 0 : index
    %8 = vector.load %arg4[%c0_6, %c0_7] : memref<128x128xf32, #tpu.memory_space<vmem>>, vector<128x128xf32>
    %cst_8 = arith.constant dense<0.000000e+00> : vector<256x128xf32>
    %9 = tpu.matmul %7, %8, %cst_8 {dimension_numbers = #tpu.dot_dimension_numbers<[1], [0], [0], [1], [0, 0, 1, 1], [], []>} : vector<256x128xf32>, vector<128x128xf32>, vector<256x128xf32> -> vector<256x128xf32>
    %c0_9 = arith.constant 0 : index
    %c0_10 = arith.constant 0 : index
    %10 = vector.load %arg5[%c0_9, %c0_10] : memref<1x128xf32, #tpu.memory_space<vmem>>, vector<1x128xf32>
    %11 = vector.broadcast %10 : vector<1x128xf32> to vector<256x128xf32>
    %12 = arith.addf %9, %11 : vector<256x128xf32>
    %cst_11 = arith.constant 0.000000e+00 : f32
    %13 = vector.broadcast %cst_11 : f32 to vector<256x128xf32>
    %14 = arith.maximumf %12, %13 : vector<256x128xf32>
    %c0_12 = arith.constant 0 : index
    %c0_13 = arith.constant 0 : index
    %15 = vector.load %arg6[%c0_12, %c0_13] : memref<128x128xf32, #tpu.memory_space<vmem>>, vector<128x128xf32>
    %cst_14 = arith.constant dense<0.000000e+00> : vector<256x128xf32>
    %16 = tpu.matmul %14, %15, %cst_14 {dimension_numbers = #tpu.dot_dimension_numbers<[1], [0], [0], [1], [0, 0, 1, 1], [], []>} : vector<256x128xf32>, vector<128x128xf32>, vector<256x128xf32> -> vector<256x128xf32>
    %c0_15 = arith.constant 0 : index
    %c0_16 = arith.constant 0 : index
    %17 = vector.load %arg7[%c0_15, %c0_16] : memref<1x128xf32, #tpu.memory_space<vmem>>, vector<1x128xf32>
    %18 = vector.broadcast %17 : vector<1x128xf32> to vector<256x128xf32>
    %19 = arith.addf %16, %18 : vector<256x128xf32>
    %c0_17 = arith.constant 0 : index
    %c0_18 = arith.constant 0 : index
    %20 = vector.load %arg8[%c0_17, %c0_18] : memref<256x128xf32, #tpu.memory_space<vmem>>, vector<256x128xf32>
    tpu.vector_store %arg8[%c0_17, %c0_18], %19 {strides = array<i32>} : memref<256x128xf32, #tpu.memory_space<vmem>>, vector<256x128xf32>,
    return
  }
  func.func @transform_0(%arg0: i32) -> (i32, i32) {
    %c0_i32 = arith.constant 0 : i32
    %c0_i32_0 = arith.constant 0 : i32
    return %arg0, %c0_i32 : i32, i32
  }
  func.func @transform_1(%arg0: i32) -> (i32, i32) {
    %c0_i32 = arith.constant 0 : i32
    %c0_i32_0 = arith.constant 0 : i32
    %c0_i32_1 = arith.constant 0 : i32
    return %c0_i32, %c0_i32_0 : i32, i32
  }
  func.func @transform_2(%arg0: i32) -> (i32, i32) {
    %c0_i32 = arith.constant 0 : i32
    %c0_i32_0 = arith.constant 0 : i32
    %c0_i32_1 = arith.constant 0 : i32
    return %c0_i32, %c0_i32_0 : i32, i32
  }
  func.func @transform_3(%arg0: i32) -> (i32, i32) {
    %c0_i32 = arith.constant 0 : i32
    %c0_i32_0 = arith.constant 0 : i32
    %c0_i32_1 = arith.constant 0 : i32
    return %c0_i32, %c0_i32_0 : i32, i32
  }
  func.func @transform_4(%arg0: i32) -> (i32, i32) {
    %c0_i32 = arith.constant 0 : i32
    %c0_i32_0 = arith.constant 0 : i32
    %c0_i32_1 = arith.constant 0 : i32
    return %c0_i32, %c0_i32_0 : i32, i32
  }
  func.func @transform_5(%arg0: i32) -> (i32, i32) {
    %c0_i32 = arith.constant 0 : i32
    %c0_i32_0 = arith.constant 0 : i32
    %c0_i32_1 = arith.constant 0 : i32
    return %c0_i32, %c0_i32_0 : i32, i32
  }
  func.func @transform_6(%arg0: i32) -> (i32, i32) {
    %c0_i32 = arith.constant 0 : i32
    %c0_i32_0 = arith.constant 0 : i32
    %c0_i32_1 = arith.constant 0 : i32
    return %c0_i32, %c0_i32_0 : i32, i32
  }
  func.func @transform_7(%arg0: i32) -> (i32, i32) {
    %c0_i32 = arith.constant 0 : i32
    %c0_i32_0 = arith.constant 0 : i32
    return %arg0, %c0_i32 : i32, i32
  }
}

module attributes {stable_mosaic.version = 11 : i64} {
  func.func @mlp3_kernel(%arg0: i32, %arg1: memref<256x128xf32, #tpu.memory_space<vmem>>, %arg2: memref<128x128xf32, #tpu.memory_space<vmem>>, %arg3: memref<1x128xf32, #tpu.memory_space<vmem>>, %arg4: memref<128x128xf32, #tpu.memory_space<vmem>>, %arg5: memref<1x128xf32, #tpu.memory_space<vmem>>, %arg6: memref<128x128xf32, #tpu.memory_space<vmem>>, %arg7: memref<1x128xf32, #tpu.memory_space<vmem>>, %arg8: memref<256x128xf32, #tpu.memory_space<vmem>>) attributes {dimension_semantics = [#tpu.dimension_semantics<parallel>], iteration_bounds = array<i64: 4>, scalar_prefetch = 0 : i64, scratch_operands = 0 : i64, tpu.core_type = #tpu.core_type<tc>, window_params = [{transform_indices = @transform_0, window_bounds = array<i64: 256, 128>}, {pipeline_mode = #tpu.pipeline_mode<synchronous>, transform_indices = @transform_1, window_bounds = array<i64: 128, 128>}, {pipeline_mode = #tpu.pipeline_mode<synchronous>, transform_indices = @transform_2, window_bounds = array<i64: 1, 128>}, {pipeline_mode = #tpu.pipeline_mode<synchronous>, transform_indices = @transform_3, window_bounds = array<i64: 128, 128>}, {pipeline_mode = #tpu.pipeline_mode<synchronous>, transform_indices = @transform_4, window_bounds = array<i64: 1, 128>}, {pipeline_mode = #tpu.pipeline_mode<synchronous>, transform_indices = @transform_5, window_bounds = array<i64: 128, 128>}, {pipeline_mode = #tpu.pipeline_mode<synchronous>, transform_indices = @transform_6, window_bounds = array<i64: 1, 128>}, {transform_indices = @transform_7, window_bounds = array<i64: 256, 128>}]} {
    %c0 = arith.constant 0 : index
    %c0_0 = arith.constant 0 : index
    %0 = vector.load %arg1[%c0, %c0_0] : memref<256x128xf32, #tpu.memory_space<vmem>>, vector<256x128xf32>
    %c0_1 = arith.constant 0 : index
    %c0_2 = arith.constant 0 : index
    %1 = vector.load %arg2[%c0_1, %c0_2] : memref<128x128xf32, #tpu.memory_space<vmem>>, vector<128x128xf32>
    %cst = arith.constant dense<0.000000e+00> : vector<256x128xf32>
    %2 = tpu.matmul %0, %1, %cst {dimension_numbers = #tpu.dot_dimension_numbers<[1], [0], [0], [1], [0, 0, 1, 1], [], []>} : vector<256x128xf32>, vector<128x128xf32>, vector<256x128xf32> -> vector<256x128xf32>
    %c0_3 = arith.constant 0 : index
    %c0_4 = arith.constant 0 : index
    %3 = vector.load %arg3[%c0_3, %c0_4] : memref<1x128xf32, #tpu.memory_space<vmem>>, vector<1x128xf32>
    %4 = vector.broadcast %3 : vector<1x128xf32> to vector<256x128xf32>
    %5 = arith.addf %2, %4 : vector<256x128xf32>
    %cst_5 = arith.constant 0.000000e+00 : f32
    %6 = vector.broadcast %cst_5 : f32 to vector<256x128xf32>
    %7 = arith.maximumf %5, %6 : vector<256x128xf32>
    %c0_6 = arith.constant 0 : index
    %c0_7 = arith.constant 0 : index
    %8 = vector.load %arg4[%c0_6, %c0_7] : memref<128x128xf32, #tpu.memory_space<vmem>>, vector<128x128xf32>
    %cst_8 = arith.constant dense<0.000000e+00> : vector<256x128xf32>
    %9 = tpu.matmul %7, %8, %cst_8 {dimension_numbers = #tpu.dot_dimension_numbers<[1], [0], [0], [1], [0, 0, 1, 1], [], []>} : vector<256x128xf32>, vector<128x128xf32>, vector<256x128xf32> -> vector<256x128xf32>
    %c0_9 = arith.constant 0 : index
    %c0_10 = arith.constant 0 : index
    %10 = vector.load %arg5[%c0_9, %c0_10] : memref<1x128xf32, #tpu.memory_space<vmem>>, vector<1x128xf32>
    %11 = vector.broadcast %10 : vector<1x128xf32> to vector<256x128xf32>
    %12 = arith.addf %9, %11 : vector<256x128xf32>
    %cst_11 = arith.constant 0.000000e+00 : f32
    %13 = vector.broadcast %cst_11 : f32 to vector<256x128xf32>
    %14 = arith.maximumf %12, %13 : vector<256x128xf32>
    %c0_12 = arith.constant 0 : index
    %c0_13 = arith.constant 0 : index
    %15 = vector.load %arg6[%c0_12, %c0_13] : memref<128x128xf32, #tpu.memory_space<vmem>>, vector<128x128xf32>
    %cst_14 = arith.constant dense<0.000000e+00> : vector<256x128xf32>
    %16 = tpu.matmul %14, %15, %cst_14 {dimension_numbers = #tpu.dot_dimension_numbers<[1], [0], [0], [1], [0, 0, 1, 1], [], []>} : vector<256x128xf32>, vector<128x128xf32>, vector<256x128xf32> -> vector<256x128xf32>
    %c0_15 = arith.constant 0 : index
    %c0_16 = arith.constant 0 : index
    %17 = vector.load %arg7[%c0_15, %c0_16] : memref<1x128xf32, #tpu.memory_space<vmem>>, vector<1x128xf32>
    %18 = vector.broadcast %17 : vector<1x128xf32> to vector<256x128xf32>
    %19 = arith.addf %16, %18 : vector<256x128xf32>
    %c0_17 = arith.constant 0 : index
    %c0_18 = arith.constant 0 : index
    %20 = vector.load %arg8[%c0_17, %c0_18] : memref<256x128xf32, #tpu.memory_space<vmem>>, vector<256x128xf32>
    tpu.vector_store %arg8[%c0_17, %c0_18], %19 {strides = array<i32>} : memref<256x128xf32, #tpu.memory_space<vmem>>, vector<256x128xf32>,
    return
  }
  func.func @transform_0(%arg0: i32) -> (i32, i32) {
    %c0_i32 = arith.constant 0 : i32
    %c0_i32_0 = arith.constant 0 : i32
    return %arg0, %c0_i32 : i32, i32
  }
  func.func @transform_1(%arg0: i32) -> (i32, i32) {
    %c0_i32 = arith.constant 0 : i32
    %c0_i32_0 = arith.constant 0 : i32
    %c0_i32_1 = arith.constant 0 : i32
    return %c0_i32, %c0_i32_0 : i32, i32
  }
  func.func @transform_2(%arg0: i32) -> (i32, i32) {
    %c0_i32 = arith.constant 0 : i32
    %c0_i32_0 = arith.constant 0 : i32
    %c0_i32_1 = arith.constant 0 : i32
    return %c0_i32, %c0_i32_0 : i32, i32
  }
  func.func @transform_3(%arg0: i32) -> (i32, i32) {
    %c0_i32 = arith.constant 0 : i32
    %c0_i32_0 = arith.constant 0 : i32
    %c0_i32_1 = arith.constant 0 : i32
    return %c0_i32, %c0_i32_0 : i32, i32
  }
  func.func @transform_4(%arg0: i32) -> (i32, i32) {
    %c0_i32 = arith.constant 0 : i32
    %c0_i32_0 = arith.constant 0 : i32
    %c0_i32_1 = arith.constant 0 : i32
    return %c0_i32, %c0_i32_0 : i32, i32
  }
  func.func @transform_5(%arg0: i32) -> (i32, i32) {
    %c0_i32 = arith.constant 0 : i32
    %c0_i32_0 = arith.constant 0 : i32
    %c0_i32_1 = arith.constant 0 : i32
    return %c0_i32, %c0_i32_0 : i32, i32
  }
  func.func @transform_6(%arg0: i32) -> (i32, i32) {
    %c0_i32 = arith.constant 0 : i32
    %c0_i32_0 = arith.constant 0 : i32
    %c0_i32_1 = arith.constant 0 : i32
    return %c0_i32, %c0_i32_0 : i32, i32
  }
  func.func @transform_7(%arg0: i32) -> (i32, i32) {
    %c0_i32 = arith.constant 0 : i32
    %c0_i32_0 = arith.constant 0 : i32
    return %arg0, %c0_i32 : i32, i32
  }
}

</mosaic_0001>

<llo_original>
// kernel: tpu_custom_call.1
$region0: #{tpu_custom_call.1}
  #allocation0 [shape = 'u32[]', space=smem, size = 0x4, offset = 0x4, fixed_abs, tag = 'smem constant byte address 0x4 - core index']
  #allocation1 [shape = 'u32[144,128]{1,0:T(1,128)}', space=vmem, size = 0x12000, scoped, tag = 'internal scratch']
  %s0 = inlined_call_operand.hbm [shape: f32[1024,128], index: 0, kind: input, shape index: {}]
  %s1 = inlined_call_operand.hbm [shape: f32[128,128], index: 1, kind: input, shape index: {}]
  %s2 = inlined_call_operand.vmem [shape: f32[1,128], index: 2, kind: input, shape index: {}]
  %s3 = inlined_call_operand.hbm [shape: f32[128,128], index: 3, kind: input, shape index: {}]
  %s4 = inlined_call_operand.vmem [shape: f32[1,128], index: 4, kind: input, shape index: {}]
  %s5 = inlined_call_operand.hbm [shape: f32[128,128], index: 5, kind: input, shape index: {}]
  %s6 = inlined_call_operand.vmem [shape: f32[1,128], index: 6, kind: input, shape index: {}]
  %s7 = inlined_call_operand.hbm [shape: f32[1024,128], index: 7, kind: output, shape index: {}]
  %s8 = sld [smem:[#allocation0]]
  $region77: #{tpu_custom_call.1} parent=0
    _
  %s10 = ssub.s32 1, %s8
  %s11 = scalar_select 0, %s10, %s8
  $region1: #{tpu_custom_call.1} parent=0
    #allocation2 [shape = 'u8[262144]{0}', space=vmem, size = 0x40000, scoped, tag = 'input window, operand 0']
    #allocation3 [shape = 's32[2]{0}', space=sflag, size = 0x8, scoped, tag = 'scoped memory for tpu_custom_call.1']
    #allocation4 [shape = 's32[2]{0}', space=sflag, size = 0x8, scoped, tag = 'scoped memory for tpu_custom_call.1']
    #allocation5 [shape = 'u8[65536]{0}', space=vmem, size = 0x10000, scoped, tag = 'input window, operand 1, single buffered']
    #allocation6 [shape = 's32[1]{0}', space=sflag, size = 0x4, scoped, tag = 'scoped memory for tpu_custom_call.1']
    #allocation7 [shape = 'u8[65536]{0}', space=vmem, size = 0x10000, scoped, tag = 'input window, operand 3, single buffered']
    #allocation8 [shape = 'u8[65536]{0}', space=vmem, size = 0x10000, scoped, tag = 'input window, operand 5, single buffered']
    #allocation9 [shape = 's32[1]{0}', space=sflag, size = 0x4, scoped, tag = 'scoped memory for tpu_custom_call.1']
    #allocation10 [shape = 'u8[262144]{0}', space=vmem, size = 0x40000, scoped, tag = 'output window, operand 0']
    %12 = vsyncpa [#allocation3], 0
    %s13 = scalar_lea.sflag [#allocation3], 1
    %14 = vsyncpa %s13, 0
    %15 = vsyncpa [#allocation6], 0
    %16 = vsyncpa [#allocation9], 0
    %17 = vsyncpa [#allocation4], 0
    %s18 = scalar_lea.sflag [#allocation4], 1
    %19 = vsyncpa %s18, 0
    loop: start=0, step=1, limit=6
    $region2: #{tpu_custom_call.1} parent=1 // loop_pre_header
      _
    $region3: #{tpu_custom_call.1} parent=1 // loop_header
      %s21 = sphi 0, %s25
      %p22 = scmp.ge.s32.totalorder %s21, 6
      %s31 = sphi 0, %s33
      %s34 = sphi 0, %s31
      %s35 = sphi 0, %s34
      %s51 = sphi 0, %s35
      %s55 = sphi 0, %s55
      %s57 = sphi 0, %s55
      %s58 = sphi 0, %s57
      %s72 = sphi 0, %s58
      %s76 = sphi 0, %s76
      %s78 = sphi 0, %s76
      %s79 = sphi 0, %s78
      %s93 = sphi 0, %s79
      %s97 = sphi 0, %s97
      %s99 = sphi 0, %s97
      %s100 = sphi 0, %s99
      %s114 = sphi 0, %s100
      %s118 = sphi 0, %s118
      %s120 = sphi 0, %s118
      %s121 = sphi 0, %s120
      %s135 = sphi 0, %s121
      %s139 = sphi 0, %s139
      %s141 = sphi 0, %s139
      %s142 = sphi 0, %s141
      %s156 = sphi 0, %s142
      %s160 = sphi 0, %s160
      %s162 = sphi 0, %s160
      %s163 = sphi 0, %s162
      %s177 = sphi 0, %s163
      %s183 = sphi 0, %s185
      %s186 = sphi 0, %s183
      %s187 = sphi 0, %s186
      %s203 = sphi 0, %s187
    $region4: #{tpu_custom_call.1} parent=1 // loop_header_branch
      %24 = sbr.rel (%p22) target = $region8
    $region5: #{tpu_custom_call.1} parent=1 // loop_body
      %s26 = ssub.s32 %s21, 1
      %s27 = ssub.s32 %s21, 2
      %s28 = sadd.s32 %s21, 1
      %s29 = ssub.s32 %s21, %s28
      %p30 = scmp.eq.s32.totalorder %s29, 0
      %s32 = sadd.s32 %s31, 1
      %s33 = scalar_select %p30, %s31, %s32
      %p36 = pneg %p30
      %p37 = scmp.eq.s32.totalorder %s21, 3
      %p38 = por %p36, %p37
      %p39 = scmp.ne.s32.totalorder %s31, %s34
      %p40 = scmp.eq.s32.totalorder %s21, 0
      %p41 = por %p39, %p40
      %p42 = scmp.ne.s32.totalorder %s31, %s34
      %p43 = scmp.eq.s32.totalorder %s26, 3
      %p44 = por %p42, %p43
      %p45 = scmp.ne.s32.totalorder %s34, %s35
      %p46 = scmp.eq.s32.totalorder %s26, 0
      %p47 = por %p45, %p46
      %p48 = scmp.ne.s32.totalorder %s34, %s35
      %p49 = scmp.eq.s32.totalorder %s27, 3
      %p50 = por %p48, %p49
      %p52 = scmp.ne.s32.totalorder %s35, %s51
      %p53 = scmp.eq.s32.totalorder %s27, 0
      %p54 = por %p52, %p53
      %s56 = sadd.s32 %s55, 1
      %p59 = scmp.eq.s32.totalorder %s21, 3
      %p60 = scmp.ne.s32.totalorder %s55, %s57
      %p61 = scmp.eq.s32.totalorder %s21, 0
      %p62 = por %p60, %p61
      %p63 = scmp.ne.s32.totalorder %s55, %s57
      %p64 = scmp.eq.s32.totalorder %s26, 3
      %p65 = por %p63, %p64
      %p66 = scmp.ne.s32.totalorder %s57, %s58
      %p67 = scmp.eq.s32.totalorder %s26, 0
      %p68 = por %p66, %p67
      %p69 = scmp.ne.s32.totalorder %s57, %s58
      %p70 = scmp.eq.s32.totalorder %s27, 3
      %p71 = por %p69, %p70
      %p73 = scmp.ne.s32.totalorder %s58, %s72
      %p74 = scmp.eq.s32.totalorder %s27, 0
      %p75 = por %p73, %p74
      %s77 = sadd.s32 %s76, 1
      %p80 = scmp.eq.s32.totalorder %s21, 3
      %p81 = scmp.ne.s32.totalorder %s76, %s78
      %p82 = scmp.eq.s32.totalorder %s21, 0
      %p83 = por %p81, %p82
      %p84 = scmp.ne.s32.totalorder %s76, %s78
      %p85 = scmp.eq.s32.totalorder %s26, 3
      %p86 = por %p84, %p85
      %p87 = scmp.ne.s32.totalorder %s78, %s79
      %p88 = scmp.eq.s32.totalorder %s26, 0
      %p89 = por %p87, %p88
      %p90 = scmp.ne.s32.totalorder %s78, %s79
      %p91 = scmp.eq.s32.totalorder %s27, 3
      %p92 = por %p90, %p91
      %p94 = scmp.ne.s32.totalorder %s79, %s93
      %p95 = scmp.eq.s32.totalorder %s27, 0
      %p96 = por %p94, %p95
      %s98 = sadd.s32 %s97, 1
      %p101 = scmp.eq.s32.totalorder %s21, 3
      %p102 = scmp.ne.s32.totalorder %s97, %s99
      %p103 = scmp.eq.s32.totalorder %s21, 0
      %p104 = por %p102, %p103
      %p105 = scmp.ne.s32.totalorder %s97, %s99
      %p106 = scmp.eq.s32.totalorder %s26, 3
      %p107 = por %p105, %p106
      %p108 = scmp.ne.s32.totalorder %s99, %s100
      %p109 = scmp.eq.s32.totalorder %s26, 0
      %p110 = por %p108, %p109
      %p111 = scmp.ne.s32.totalorder %s99, %s100
      %p112 = scmp.eq.s32.totalorder %s27, 3
      %p113 = por %p111, %p112
      %p115 = scmp.ne.s32.totalorder %s100, %s114
      %p116 = scmp.eq.s32.totalorder %s27, 0
      %p117 = por %p115, %p116
      %s119 = sadd.s32 %s118, 1
      %p122 = scmp.eq.s32.totalorder %s21, 3
      %p123 = scmp.ne.s32.totalorder %s118, %s120
      %p124 = scmp.eq.s32.totalorder %s21, 0
      %p125 = por %p123, %p124
      %p126 = scmp.ne.s32.totalorder %s118, %s120
      %p127 = scmp.eq.s32.totalorder %s26, 3
      %p128 = por %p126, %p127
      %p129 = scmp.ne.s32.totalorder %s120, %s121
      %p130 = scmp.eq.s32.totalorder %s26, 0
      %p131 = por %p129, %p130
      %p132 = scmp.ne.s32.totalorder %s120, %s121
      %p133 = scmp.eq.s32.totalorder %s27, 3
      %p134 = por %p132, %p133
      %p136 = scmp.ne.s32.totalorder %s121, %s135
      %p137 = scmp.eq.s32.totalorder %s27, 0
      %p138 = por %p136, %p137
      %s140 = sadd.s32 %s139, 1
      %p143 = scmp.eq.s32.totalorder %s21, 3
      %p144 = scmp.ne.s32.totalorder %s139, %s141
      %p145 = scmp.eq.s32.totalorder %s21, 0
      %p146 = por %p144, %p145
      %p147 = scmp.ne.s32.totalorder %s139, %s141
      %p148 = scmp.eq.s32.totalorder %s26, 3
      %p149 = por %p147, %p148
      %p150 = scmp.ne.s32.totalorder %s141, %s142
      %p151 = scmp.eq.s32.totalorder %s26, 0
      %p152 = por %p150, %p151
      %p153 = scmp.ne.s32.totalorder %s141, %s142
      %p154 = scmp.eq.s32.totalorder %s27, 3
      %p155 = por %p153, %p154
      %p157 = scmp.ne.s32.totalorder %s142, %s156
      %p158 = scmp.eq.s32.totalorder %s27, 0
      %p159 = por %p157, %p158
      %s161 = sadd.s32 %s160, 1
      %p164 = scmp.eq.s32.totalorder %s21, 3
      %p165 = scmp.ne.s32.totalorder %s160, %s162
      %p166 = scmp.eq.s32.totalorder %s21, 0
      %p167 = por %p165, %p166
      %p168 = scmp.ne.s32.totalorder %s160, %s162
      %p169 = scmp.eq.s32.totalorder %s26, 3
      %p170 = por %p168, %p169
      %p171 = scmp.ne.s32.totalorder %s162, %s163
      %p172 = scmp.eq.s32.totalorder %s26, 0
      %p173 = por %p171, %p172
      %p174 = scmp.ne.s32.totalorder %s162, %s163
      %p175 = scmp.eq.s32.totalorder %s27, 3
      %p176 = por %p174, %p175
      %p178 = scmp.ne.s32.totalorder %s163, %s177
      %p179 = scmp.eq.s32.totalorder %s27, 0
      %p180 = por %p178, %p179
      %s181 = ssub.s32 %s21, %s28
      %p182 = scmp.eq.s32.totalorder %s181, 0
      %s184 = sadd.s32 %s183, 1
      %s185 = scalar_select %p182, %s183, %s184
      %p188 = pneg %p182
      %p189 = scmp.eq.s32.totalorder %s21, 3
      %p190 = por %p188, %p189
      %p191 = scmp.ne.s32.totalorder %s183, %s186
      %p192 = scmp.eq.s32.totalorder %s21, 0
      %p193 = por %p191, %p192
      %p194 = scmp.ne.s32.totalorder %s183, %s186
      %p195 = scmp.eq.s32.totalorder %s26, 3
      %p196 = por %p194, %p195
      %p197 = scmp.ne.s32.totalorder %s186, %s187
      %p198 = scmp.eq.s32.totalorder %s26, 0
      %p199 = por %p197, %p198
      %p200 = scmp.ne.s32.totalorder %s186, %s187
      %p201 = scmp.eq.s32.totalorder %s27, 3
      %p202 = por %p200, %p201
      %p204 = scmp.ne.s32.totalorder %s187, %s203
      %p205 = scmp.eq.s32.totalorder %s27, 0
      %p206 = por %p204, %p205
      %p207 = scmp.le.s32.totalorder 1, %s21
      %p208 = scmp.lt.s32.totalorder %s21, 5
      %p209 = pnand %p207, %p208
      %p210 = pneg %p209
      // Predicated region
      $region9: #{tpu_custom_call.1} parent=5 // pred_check
        _
      $region10: #{tpu_custom_call.1} parent=5 // pred_check_branch
        %212 = sbr.rel (%p209) target = $region12
      $region11: #{tpu_custom_call.1} parent=5 // pred_region
        %s213 = ssub.s32 %s21, 1
        // Predicated region
        $region13: #{tpu_custom_call.1} parent=11 // pred_check
          %p214 = pneg %p68
        $region14: #{tpu_custom_call.1} parent=11 // pred_check_branch
          %216 = sbr.rel (%p214) target = $region16
        $region15: #{tpu_custom_call.1} parent=11 // pred_region
          %s218 = ssub.s32 2048, 2048
          %219 = vsyncadd [#allocation6], %s218
          %s220 = sshll.u32 [#allocation5], 4
          %s221 = int_to_ptr.vmem [resolvable:$true] %s220
          %226 = dma.hbm_to_vmem [thread:$0]  %s1, 2048, %s221, [#allocation6], 128, 128, 8
        $region16: #{tpu_custom_call.1} parent=11 // pred_fallthru
          _
        // Predicated region
        $region17: #{tpu_custom_call.1} parent=11 // pred_check
          %p227 = pneg %p89
        $region18: #{tpu_custom_call.1} parent=11 // pred_check_branch
          %229 = sbr.rel (%p227) target = $region20
        $region19: #{tpu_custom_call.1} parent=11 // pred_region
          _
        $region20: #{tpu_custom_call.1} parent=11 // pred_fallthru
          _
        // Predicated region
        $region21: #{tpu_custom_call.1} parent=11 // pred_check
          %p230 = pneg %p110
        $region22: #{tpu_custom_call.1} parent=11 // pred_check_branch
          %232 = sbr.rel (%p230) target = $region24
        $region23: #{tpu_custom_call.1} parent=11 // pred_region
          %s234 = ssub.s32 2048, 2048
          %235 = vsyncadd [#allocation6], %s234
          %s236 = sshll.u32 [#allocation7], 4
          %s237 = int_to_ptr.vmem [resolvable:$true] %s236
          %242 = dma.hbm_to_vmem [thread:$0]  %s3, 2048, %s237, [#allocation6], 128, 128, 8
        $region24: #{tpu_custom_call.1} parent=11 // pred_fallthru
          _
        // Predicated region
        $region25: #{tpu_custom_call.1} parent=11 // pred_check
          %p243 = pneg %p131
        $region26: #{tpu_custom_call.1} parent=11 // pred_check_branch
          %245 = sbr.rel (%p243) target = $region28
        $region27: #{tpu_custom_call.1} parent=11 // pred_region
          _
        $region28: #{tpu_custom_call.1} parent=11 // pred_fallthru
          _
        // Predicated region
        $region29: #{tpu_custom_call.1} parent=11 // pred_check
          %p246 = pneg %p152
        $region30: #{tpu_custom_call.1} parent=11 // pred_check_branch
          %248 = sbr.rel (%p246) target = $region32
        $region31: #{tpu_custom_call.1} parent=11 // pred_region
          %s250 = ssub.s32 2048, 2048
          %251 = vsyncadd [#allocation9], %s250
          %s252 = sshll.u32 [#allocation8], 4
          %s253 = int_to_ptr.vmem [resolvable:$true] %s252
          %258 = dma.hbm_to_vmem [thread:$0]  %s5, 2048, %s253, [#allocation9], 128, 128, 8
        $region32: #{tpu_custom_call.1} parent=11 // pred_fallthru
          _
        // Predicated region
        $region33: #{tpu_custom_call.1} parent=11 // pred_check
          %p259 = pneg %p173
        $region34: #{tpu_custom_call.1} parent=11 // pred_check_branch
          %261 = sbr.rel (%p259) target = $region36
        $region35: #{tpu_custom_call.1} parent=11 // pred_region
          _
        $region36: #{tpu_custom_call.1} parent=11 // pred_fallthru
          _
      $region12: #{tpu_custom_call.1} parent=5 // pred_fallthru
        _
      %p262 = scmp.lt.s32.totalorder %s21, 4
      // Predicated region
      $region37: #{tpu_custom_call.1} parent=5 // pred_check
        %p263 = pneg %p262
      $region38: #{tpu_custom_call.1} parent=5 // pred_check_branch
        %265 = sbr.rel (%p263) target = $region40
      $region39: #{tpu_custom_call.1} parent=5 // pred_region
        // Predicated region
        $region41: #{tpu_custom_call.1} parent=39 // pred_check
          %p266 = pneg %p41
        $region42: #{tpu_custom_call.1} parent=39 // pred_check_branch
          %268 = sbr.rel (%p266) target = $region44
        $region43: #{tpu_custom_call.1} parent=39 // pred_region
          %s269 = sand.u32 %s31, 1
          %s270 = scalar_lea.sflag [#allocation3], %s269
          %s271 = sand.u32 %s31, 1
          %s272 = smul.addr %s271, 256
          %s273 = scalar_lea.vmem [#allocation2], %s272
          %s274 = smul.u32 32, %s21
          %s276 = ssub.s32 4096, 4096
          %277 = vsyncadd %s270, %s276
          %s278 = smul.addr %s274, 128
          %s279 = scalar_lea.hbm %s0, %s278
          %s280 = sshll.u32 %s273, 4
          %s281 = int_to_ptr.vmem [resolvable:$true] %s280
          %286 = dma.hbm_to_vmem [thread:$0]  %s279, 4096, %s281, %s270, 128, 128, 8
        $region44: #{tpu_custom_call.1} parent=39 // pred_fallthru
          _
      $region40: #{tpu_custom_call.1} parent=5 // pred_fallthru
        _
      %p287 = scmp.le.s32.totalorder 1, %s21
      %p288 = scmp.lt.s32.totalorder %s21, 5
      %p289 = pnand %p287, %p288
      %p290 = pneg %p289
      // Predicated region
      $region45: #{tpu_custom_call.1} parent=5 // pred_check
        _
      $region46: #{tpu_custom_call.1} parent=5 // pred_check_branch
        %292 = sbr.rel (%p289) target = $region48
      $region47: #{tpu_custom_call.1} parent=5 // pred_region
        %s293 = ssub.s32 %s21, 1
        %s294 = sand.u32 %s34, 1
        %s295 = scalar_lea.sflag [#allocation3], %s294
        %s296 = sand.u32 %s34, 1
        %s297 = smul.addr %s296, 256
        %s298 = scalar_lea.vmem [#allocation2], %s297
        // Predicated region
        $region49: #{tpu_custom_call.1} parent=47 // pred_check
          %p299 = pneg %p47
        $region50: #{tpu_custom_call.1} parent=47 // pred_check_branch
          %301 = sbr.rel (%p299) target = $region52
        $region51: #{tpu_custom_call.1} parent=47 // pred_region
          %302 = dma.done %s295, 4096
        $region52: #{tpu_custom_call.1} parent=47 // pred_fallthru
          _
        // Predicated region
        $region53: #{tpu_custom_call.1} parent=47 // pred_check
          %p303 = pneg %p68
        $region54: #{tpu_custom_call.1} parent=47 // pred_check_branch
          %305 = sbr.rel (%p303) target = $region56
        $region55: #{tpu_custom_call.1} parent=47 // pred_region
          %306 = dma.done [#allocation6], 2048
        $region56: #{tpu_custom_call.1} parent=47 // pred_fallthru
          _
        // Predicated region
        $region57: #{tpu_custom_call.1} parent=47 // pred_check
          %p307 = pneg %p110
        $region58: #{tpu_custom_call.1} parent=47 // pred_check_branch
          %309 = sbr.rel (%p307) target = $region60
        $region59: #{tpu_custom_call.1} parent=47 // pred_region
          %310 = dma.done [#allocation6], 2048
        $region60: #{tpu_custom_call.1} parent=47 // pred_fallthru
          _
        // Predicated region
        $region61: #{tpu_custom_call.1} parent=47 // pred_check
          %p311 = pneg %p152
        $region62: #{tpu_custom_call.1} parent=47 // pred_check_branch
          %313 = sbr.rel (%p311) target = $region64
        $region63: #{tpu_custom_call.1} parent=47 // pred_region
          %314 = dma.done [#allocation9], 2048
        $region64: #{tpu_custom_call.1} parent=47 // pred_fallthru
          _
        %s315 = sand.u32 %s34, 1
        %s316 = scalar_lea.sflag [#allocation3], %s315
        %s317 = sand.u32 %s34, 1
        %s318 = smul.addr %s317, 256
        %s319 = scalar_lea.vmem [#allocation2], %s318
        %p320 = pneg %p47
        %p321 = pneg %p44
        %p322 = pneg %p68
        %p323 = pneg %p65
        %p324 = pneg %p89
        %p325 = pneg %p86
        %p326 = pneg %p110
        %p327 = pneg %p107
        %p328 = pneg %p131
        %p329 = pneg %p128
        %p330 = pneg %p152
        %p331 = pneg %p149
        %p332 = pneg %p173
        %p333 = pneg %p170
        %p334 = pneg %p199
        %p335 = pneg %p196
        %s336 = sand.u32 %s186, 1
        %s337 = scalar_lea.sflag [#allocation4], %s336
        %s338 = sand.u32 %s186, 1
        %s339 = smul.addr %s338, 256
        %s340 = scalar_lea.vmem [#allocation10], %s339
        %s341 = smul.u32 32, %s26
        %s342 = smul.u32 32, %s26
        %v343 = vld [vmem:[%s298] sm:$0xff]
        %v344 = vld [vmem:[%s298 + $0x8] sm:$0xff]
        %v345 = vld [vmem:[%s298 + $0x10] sm:$0xff]
        %v346 = vld [vmem:[%s298 + $0x18] sm:$0xff]
        %v347 = vld [vmem:[%s298 + $0x20] sm:$0xff]
        %v348 = vld [vmem:[%s298 + $0x28] sm:$0xff]
        %v349 = vld [vmem:[%s298 + $0x30] sm:$0xff]
        %v350 = vld [vmem:[%s298 + $0x38] sm:$0xff]
        %v351 = vld [vmem:[%s298 + $0x40] sm:$0xff]
        %v352 = vld [vmem:[%s298 + $0x48] sm:$0xff]
        %v353 = vld [vmem:[%s298 + $0x50] sm:$0xff]
        %v354 = vld [vmem:[%s298 + $0x58] sm:$0xff]
        %v355 = vld [vmem:[%s298 + $0x60] sm:$0xff]
        %v356 = vld [vmem:[%s298 + $0x68] sm:$0xff]
        %v357 = vld [vmem:[%s298 + $0x70] sm:$0xff]
        %v358 = vld [vmem:[%s298 + $0x78] sm:$0xff]
        %v359 = vld [vmem:[%s298 + $0x80] sm:$0xff]
        %v360 = vld [vmem:[%s298 + $0x88] sm:$0xff]
        %v361 = vld [vmem:[%s298 + $0x90] sm:$0xff]
        %v362 = vld [vmem:[%s298 + $0x98] sm:$0xff]
        %v363 = vld [vmem:[%s298 + $0xa0] sm:$0xff]
        %v364 = vld [vmem:[%s298 + $0xa8] sm:$0xff]
        %v365 = vld [vmem:[%s298 + $0xb0] sm:$0xff]
        %v366 = vld [vmem:[%s298 + $0xb8] sm:$0xff]
        %v367 = vld [vmem:[%s298 + $0xc0] sm:$0xff]
        %v368 = vld [vmem:[%s298 + $0xc8] sm:$0xff]
        %v369 = vld [vmem:[%s298 + $0xd0] sm:$0xff]
        %v370 = vld [vmem:[%s298 + $0xd8] sm:$0xff]
        %v371 = vld [vmem:[%s298 + $0xe0] sm:$0xff]
        %v372 = vld [vmem:[%s298 + $0xe8] sm:$0xff]
        %v373 = vld [vmem:[%s298 + $0xf0] sm:$0xff]
        %v374 = vld [vmem:[%s298 + $0xf8] sm:$0xff]
        %v375 = vld [vmem:[#allocation5] sm:$0xff]
        %v376 = vld [vmem:[#allocation5 + $0x8] sm:$0xff]
        %v377 = vld [vmem:[#allocation5 + $0x10] sm:$0xff]
        %v378 = vld [vmem:[#allocation5 + $0x18] sm:$0xff]
        %v379 = vld [vmem:[#allocation5 + $0x20] sm:$0xff]
        %v380 = vld [vmem:[#allocation5 + $0x28] sm:$0xff]
        %v381 = vld [vmem:[#allocation5 + $0x30] sm:$0xff]
        %v382 = vld [vmem:[#allocation5 + $0x38] sm:$0xff]
        %v383 = vld [vmem:[#allocation5 + $0x40] sm:$0xff]
        %v384 = vld [vmem:[#allocation5 + $0x48] sm:$0xff]
        %v385 = vld [vmem:[#allocation5 + $0x50] sm:$0xff]
        %v386 = vld [vmem:[#allocation5 + $0x58] sm:$0xff]
        %v387 = vld [vmem:[#allocation5 + $0x60] sm:$0xff]
        %v388 = vld [vmem:[#allocation5 + $0x68] sm:$0xff]
        %v389 = vld [vmem:[#allocation5 + $0x70] sm:$0xff]
        %v390 = vld [vmem:[#allocation5 + $0x78] sm:$0xff]
        %v391 = vld [vmem:[%s2] sm:$0x1]
        %v393 = vlaneseq
        %v394 = vshrl.u32 %v393, 7
        %v395 = vsub.s32 0, %v394
        %v396 = vrot.slane %v391, %v395
        %398 = vmatprep.subr.mxu0 0.0
        %399 = vmatpush1.msra.mxu0 %v375
        %400 = vmatprep.subr.mxu0 0.0
        %401 = vmatpush1.msra.mxu0 %v376
        %402 = vmatprep.subr.mxu0 0.0
        %403 = vmatpush1.msra.mxu0 %v377
        %404 = vmatprep.subr.mxu0 0.0
        %405 = vmatpush1.msra.mxu0 %v378
        %406 = vmatprep.subr.mxu0 0.0
        %407 = vmatpush1.msra.mxu0 %v379
        %408 = vmatprep.subr.mxu0 0.0
        %409 = vmatpush1.msra.mxu0 %v380
        %410 = vmatprep.subr.mxu0 0.0
        %411 = vmatpush1.msra.mxu0 %v381
        %412 = vmatprep.subr.mxu0 0.0
        %413 = vmatpush1.msra.mxu0 %v382
        %414 = vmatprep.subr.mxu0 0.0
        %415 = vmatpush1.msra.mxu0 %v383
        %416 = vmatprep.subr.mxu0 0.0
        %417 = vmatpush1.msra.mxu0 %v384
        %418 = vmatprep.subr.mxu0 0.0
        %419 = vmatpush1.msra.mxu0 %v385
        %420 = vmatprep.subr.mxu0 0.0
        %421 = vmatpush1.msra.mxu0 %v386
        %422 = vmatprep.subr.mxu0 0.0
        %423 = vmatpush1.msra.mxu0 %v387
        %424 = vmatprep.subr.mxu0 0.0
        %425 = vmatpush1.msra.mxu0 %v388
        %426 = vmatprep.subr.mxu0 0.0
        %427 = vmatpush1.msra.mxu0 %v389
        %428 = vmatprep.subr.mxu0 0.0
        %429 = vmatpush1.msra.mxu0 %v390
        %430 = vmatprep.subr.mxu0 0.0
        %431 = vmatpush1.msra.mxu0 0.0
        %432 = vmatprep.subr.mxu0 0.0
        %433 = vmatpush1.msra.mxu0 0.0
        %434 = vmatprep.subr.mxu0 0.0
        %435 = vmatpush1.msra.mxu0 0.0
        %436 = vmatprep.subr.mxu0 0.0
        %437 = vmatpush1.msra.mxu0 0.0
        %438 = vmatprep.subr.mxu0 0.0
        %439 = vmatpush1.msra.mxu0 0.0
        %440 = vmatprep.subr.mxu0 0.0
        %441 = vmatpush1.msra.mxu0 0.0
        %442 = vmatprep.subr.mxu0 0.0
        %443 = vmatpush1.msra.mxu0 0.0
        %444 = vmatprep.subr.mxu0 0.0
        %445 = vmatpush1.msra.mxu0 0.0
        %446 = vmatprep.subr.mxu0 0.0
        %447 = vmatpush1.msra.mxu0 0.0
        %448 = vmatprep.subr.mxu0 0.0
        %449 = vmatpush1.msra.mxu0 0.0
        %450 = vmatprep.subr.mxu0 0.0
        %451 = vmatpush1.msra.mxu0 0.0
        %452 = vmatprep.subr.mxu0 0.0
        %453 = vmatpush1.msra.mxu0 0.0
        %454 = vmatprep.subr.mxu0 0.0
        %455 = vmatpush1.msra.mxu0 0.0
        %456 = vmatprep.subr.mxu0 0.0
        %457 = vmatpush1.msra.mxu0 0.0
        %458 = vmatprep.subr.mxu0 0.0
        %459 = vmatpush1.msra.mxu0 0.0
        %460 = vmatprep.subr.mxu0 0.0
        %461 = vmatpush1.msra.mxu0 0.0
        %462 = vmatprep.mubr.f32.mxu0 0.0
        %463 = vmatmul.mubr.f32.gmra.mrb[0].mxu0 %v343
        %v464 = vpop.f32.mrb[0].mxu0
        %v465 = vadd.f32 %v396, %v464
        %v466 = vpop.f32.mrb[0].mxu0
        %467 = vmatprep.mubr.f32.mxu0 0.0
        %468 = vmatmul.mubr.f32.gmra.mrb[0].mxu0 %v344
        %v469 = vpop.f32.mrb[0].mxu0
        %v470 = vadd.f32 %v396, %v469
        %v471 = vpop.f32.mrb[0].mxu0
        %472 = vmatprep.mubr.f32.mxu0 0.0
        %473 = vmatmul.mubr.f32.gmra.mrb[0].mxu0 %v345
        %v474 = vpop.f32.mrb[0].mxu0
        %v475 = vadd.f32 %v396, %v474
        %v476 = vpop.f32.mrb[0].mxu0
        %477 = vmatprep.mubr.f32.mxu0 0.0
        %478 = vmatmul.mubr.f32.gmra.mrb[0].mxu0 %v346
        %v479 = vpop.f32.mrb[0].mxu0
        %v480 = vadd.f32 %v396, %v479
        %v481 = vpop.f32.mrb[0].mxu0
        %482 = vmatprep.mubr.f32.mxu0 0.0
        %483 = vmatmul.mubr.f32.gmra.mrb[0].mxu0 %v347
        %v484 = vpop.f32.mrb[0].mxu0
        %v485 = vadd.f32 %v396, %v484
        %v486 = vpop.f32.mrb[0].mxu0
        %487 = vmatprep.mubr.f32.mxu0 0.0
        %488 = vmatmul.mubr.f32.gmra.mrb[0].mxu0 %v348
        %v489 = vpop.f32.mrb[0].mxu0
        %v490 = vadd.f32 %v396, %v489
        %v491 = vpop.f32.mrb[0].mxu0
        %492 = vmatprep.mubr.f32.mxu0 0.0
        %493 = vmatmul.mubr.f32.gmra.mrb[0].mxu0 %v349
        %v494 = vpop.f32.mrb[0].mxu0
        %v495 = vadd.f32 %v396, %v494
        %v496 = vpop.f32.mrb[0].mxu0
        %497 = vmatprep.mubr.f32.mxu0 0.0
        %498 = vmatmul.mubr.f32.gmra.mrb[0].mxu0 %v350
        %v499 = vpop.f32.mrb[0].mxu0
        %v500 = vadd.f32 %v396, %v499
        %v501 = vpop.f32.mrb[0].mxu0
        %502 = vmatprep.mubr.f32.mxu0 0.0
        %503 = vmatmul.mubr.f32.gmra.mrb[0].mxu0 %v351
        %v504 = vpop.f32.mrb[0].mxu0
        %v505 = vadd.f32 %v396, %v504
        %v506 = vpop.f32.mrb[0].mxu0
        %507 = vmatprep.mubr.f32.mxu0 0.0
        %508 = vmatmul.mubr.f32.gmra.mrb[0].mxu0 %v352
        %v509 = vpop.f32.mrb[0].mxu0
        %v510 = vadd.f32 %v396, %v509
        %v511 = vpop.f32.mrb[0].mxu0
        %512 = vmatprep.mubr.f32.mxu0 0.0
        %513 = vmatmul.mubr.f32.gmra.mrb[0].mxu0 %v353
        %v514 = vpop.f32.mrb[0].mxu0
        %v515 = vadd.f32 %v396, %v514
        %v516 = vpop.f32.mrb[0].mxu0
        %517 = vmatprep.mubr.f32.mxu0 0.0
        %518 = vmatmul.mubr.f32.gmra.mrb[0].mxu0 %v354
        %v519 = vpop.f32.mrb[0].mxu0
        %v520 = vadd.f32 %v396, %v519
        %v521 = vpop.f32.mrb[0].mxu0
        %522 = vmatprep.mubr.f32.mxu0 0.0
        %523 = vmatmul.mubr.f32.gmra.mrb[0].mxu0 %v355
        %v524 = vpop.f32.mrb[0].mxu0
        %v525 = vadd.f32 %v396, %v524
        %v526 = vpop.f32.mrb[0].mxu0
        %527 = vmatprep.mubr.f32.mxu0 0.0
        %528 = vmatmul.mubr.f32.gmra.mrb[0].mxu0 %v356
        %v529 = vpop.f32.mrb[0].mxu0
        %v530 = vadd.f32 %v396, %v529
        %v531 = vpop.f32.mrb[0].mxu0
        %532 = vmatprep.mubr.f32.mxu0 0.0
        %533 = vmatmul.mubr.f32.gmra.mrb[0].mxu0 %v357
        %v534 = vpop.f32.mrb[0].mxu0
        %v535 = vadd.f32 %v396, %v534
        %v536 = vpop.f32.mrb[0].mxu0
        %537 = vmatprep.mubr.f32.mxu0 0.0
        %538 = vmatmul.mubr.f32.gmra.mrb[0].mxu0 %v358
        %v539 = vpop.f32.mrb[0].mxu0
        %v540 = vadd.f32 %v396, %v539
        %v541 = vpop.f32.mrb[0].mxu0
        %542 = vmatprep.mubr.f32.mxu0 0.0
        %543 = vmatmul.mubr.f32.gmra.mrb[0].mxu0 %v359
        %v544 = vpop.f32.mrb[0].mxu0
        %v545 = vadd.f32 %v396, %v544
        %v546 = vpop.f32.mrb[0].mxu0
        %547 = vmatprep.mubr.f32.mxu0 0.0
        %548 = vmatmul.mubr.f32.gmra.mrb[0].mxu0 %v360
        %v549 = vpop.f32.mrb[0].mxu0
        %v550 = vadd.f32 %v396, %v549
        %v551 = vpop.f32.mrb[0].mxu0
        %552 = vmatprep.mubr.f32.mxu0 0.0
        %553 = vmatmul.mubr.f32.gmra.mrb[0].mxu0 %v361
        %v554 = vpop.f32.mrb[0].mxu0
        %v555 = vadd.f32 %v396, %v554
        %v556 = vpop.f32.mrb[0].mxu0
        %557 = vmatprep.mubr.f32.mxu0 0.0
        %558 = vmatmul.mubr.f32.gmra.mrb[0].mxu0 %v362
        %v559 = vpop.f32.mrb[0].mxu0
        %v560 = vadd.f32 %v396, %v559
        %v561 = vpop.f32.mrb[0].mxu0
        %562 = vmatprep.mubr.f32.mxu0 0.0
        %563 = vmatmul.mubr.f32.gmra.mrb[0].mxu0 %v363
        %v564 = vpop.f32.mrb[0].mxu0
        %v565 = vadd.f32 %v396, %v564
        %v566 = vpop.f32.mrb[0].mxu0
        %567 = vmatprep.mubr.f32.mxu0 0.0
        %568 = vmatmul.mubr.f32.gmra.mrb[0].mxu0 %v364
        %v569 = vpop.f32.mrb[0].mxu0
        %v570 = vadd.f32 %v396, %v569
        %v571 = vpop.f32.mrb[0].mxu0
        %572 = vmatprep.mubr.f32.mxu0 0.0
        %573 = vmatmul.mubr.f32.gmra.mrb[0].mxu0 %v365
        %v574 = vpop.f32.mrb[0].mxu0
        %v575 = vadd.f32 %v396, %v574
        %v576 = vpop.f32.mrb[0].mxu0
        %577 = vmatprep.mubr.f32.mxu0 0.0
        %578 = vmatmul.mubr.f32.gmra.mrb[0].mxu0 %v366
        %v579 = vpop.f32.mrb[0].mxu0
        %v580 = vadd.f32 %v396, %v579
        %v581 = vpop.f32.mrb[0].mxu0
        %582 = vmatprep.mubr.f32.mxu0 0.0
        %583 = vmatmul.mubr.f32.gmra.mrb[0].mxu0 %v367
        %v584 = vpop.f32.mrb[0].mxu0
        %v585 = vadd.f32 %v396, %v584
        %v586 = vpop.f32.mrb[0].mxu0
        %587 = vmatprep.mubr.f32.mxu0 0.0
        %588 = vmatmul.mubr.f32.gmra.mrb[0].mxu0 %v368
        %v589 = vpop.f32.mrb[0].mxu0
        %v590 = vadd.f32 %v396, %v589
        %v591 = vpop.f32.mrb[0].mxu0
        %592 = vmatprep.mubr.f32.mxu0 0.0
        %593 = vmatmul.mubr.f32.gmra.mrb[0].mxu0 %v369
        %v594 = vpop.f32.mrb[0].mxu0
        %v595 = vadd.f32 %v396, %v594
        %v596 = vpop.f32.mrb[0].mxu0
        %597 = vmatprep.mubr.f32.mxu0 0.0
        %598 = vmatmul.mubr.f32.gmra.mrb[0].mxu0 %v370
        %v599 = vpop.f32.mrb[0].mxu0
        %v600 = vadd.f32 %v396, %v599
        %v601 = vpop.f32.mrb[0].mxu0
        %602 = vmatprep.mubr.f32.mxu0 0.0
        %603 = vmatmul.mubr.f32.gmra.mrb[0].mxu0 %v371
        %v604 = vpop.f32.mrb[0].mxu0
        %v605 = vadd.f32 %v396, %v604
        %v606 = vpop.f32.mrb[0].mxu0
        %607 = vmatprep.mubr.f32.mxu0 0.0
        %608 = vmatmul.mubr.f32.gmra.mrb[0].mxu0 %v372
        %v609 = vpop.f32.mrb[0].mxu0
        %v610 = vadd.f32 %v396, %v609
        %v611 = vpop.f32.mrb[0].mxu0
        %612 = vmatprep.mubr.f32.mxu0 0.0
        %613 = vmatmul.mubr.f32.gmra.mrb[0].mxu0 %v373
        %v614 = vpop.f32.mrb[0].mxu0
        %v615 = vadd.f32 %v396, %v614
        %v616 = vpop.f32.mrb[0].mxu0
        %617 = vmatprep.mubr.f32.mxu0 0.0
        %618 = vmatmul.mubr.f32.gmra.mrb[0].mxu0 %v374
        %v619 = vpop.f32.mrb[0].mxu0
        %v620 = vadd.f32 %v396, %v619
        %v621 = vpop.f32.mrb[0].mxu0
        %622 = vdwg.mxu0
        %v623 = vmax.f32 %v465, 0.0
        %v624 = vmax.f32 %v470, 0.0
        %v625 = vmax.f32 %v475, 0.0
        %v626 = vmax.f32 %v480, 0.0
        %v627 = vmax.f32 %v485, 0.0
        %v628 = vmax.f32 %v490, 0.0
        %v629 = vmax.f32 %v495, 0.0
        %v630 = vmax.f32 %v500, 0.0
        %v631 = vmax.f32 %v505, 0.0
        %v632 = vmax.f32 %v510, 0.0
        %v633 = vmax.f32 %v515, 0.0
        %v634 = vmax.f32 %v520, 0.0
        %v635 = vmax.f32 %v525, 0.0
        %v636 = vmax.f32 %v530, 0.0
        %v637 = vmax.f32 %v535, 0.0
        %v638 = vmax.f32 %v540, 0.0
        %v639 = vmax.f32 %v545, 0.0
        %v640 = vmax.f32 %v550, 0.0
        %v641 = vmax.f32 %v555, 0.0
        %v642 = vmax.f32 %v560, 0.0
        %v643 = vmax.f32 %v565, 0.0
        %v644 = vmax.f32 %v570, 0.0
        %v645 = vmax.f32 %v575, 0.0
        %v646 = vmax.f32 %v580, 0.0
        %v647 = vmax.f32 %v585, 0.0
        %v648 = vmax.f32 %v590, 0.0
        %v649 = vmax.f32 %v595, 0.0
        %v650 = vmax.f32 %v600, 0.0
        %v651 = vmax.f32 %v605, 0.0
        %v652 = vmax.f32 %v610, 0.0
        %v653 = vmax.f32 %v615, 0.0
        %v654 = vmax.f32 %v620, 0.0
        %v655 = vld [vmem:[#allocation7] sm:$0xff]
        %v656 = vld [vmem:[#allocation7 + $0x8] sm:$0xff]
        %v657 = vld [vmem:[#allocation7 + $0x10] sm:$0xff]
        %v658 = vld [vmem:[#allocation7 + $0x18] sm:$0xff]
        %v659 = vld [vmem:[#allocation7 + $0x20] sm:$0xff]
        %v660 = vld [vmem:[#allocation7 + $0x28] sm:$0xff]
        %v661 = vld [vmem:[#allocation7 + $0x30] sm:$0xff]
        %v662 = vld [vmem:[#allocation7 + $0x38] sm:$0xff]
        %v663 = vld [vmem:[#allocation7 + $0x40] sm:$0xff]
        %v664 = vld [vmem:[#allocation7 + $0x48] sm:$0xff]
        %v665 = vld [vmem:[#allocation7 + $0x50] sm:$0xff]
        %v666 = vld [vmem:[#allocation7 + $0x58] sm:$0xff]
        %v667 = vld [vmem:[#allocation7 + $0x60] sm:$0xff]
        %v668 = vld [vmem:[#allocation7 + $0x68] sm:$0xff]
        %v669 = vld [vmem:[#allocation7 + $0x70] sm:$0xff]
        %v670 = vld [vmem:[#allocation7 + $0x78] sm:$0xff]
        %v671 = vld [vmem:[%s4] sm:$0x1]
        %v673 = vlaneseq
        %v674 = vshrl.u32 %v673, 7
        %v675 = vsub.s32 0, %v674
        %v676 = vrot.slane %v671, %v675
        %678 = vmatprep.subr.mxu0 0.0
        %679 = vmatpush1.msra.mxu0 %v655
        %680 = vmatprep.subr.mxu0 0.0
        %681 = vmatpush1.msra.mxu0 %v656
        %682 = vmatprep.subr.mxu0 0.0
        %683 = vmatpush1.msra.mxu0 %v657
        %684 = vmatprep.subr.mxu0 0.0
        %685 = vmatpush1.msra.mxu0 %v658
        %686 = vmatprep.subr.mxu0 0.0
        %687 = vmatpush1.msra.mxu0 %v659
        %688 = vmatprep.subr.mxu0 0.0
        %689 = vmatpush1.msra.mxu0 %v660
        %690 = vmatprep.subr.mxu0 0.0
        %691 = vmatpush1.msra.mxu0 %v661
        %692 = vmatprep.subr.mxu0 0.0
        %693 = vmatpush1.msra.mxu0 %v662
        %694 = vmatprep.subr.mxu0 0.0
        %695 = vmatpush1.msra.mxu0 %v663
        %696 = vmatprep.subr.mxu0 0.0
        %697 = vmatpush1.msra.mxu0 %v664
        %698 = vmatprep.subr.mxu0 0.0
        %699 = vmatpush1.msra.mxu0 %v665
        %700 = vmatprep.subr.mxu0 0.0
        %701 = vmatpush1.msra.mxu0 %v666
        %702 = vmatprep.subr.mxu0 0.0
        %703 = vmatpush1.msra.mxu0 %v667
        %704 = vmatprep.subr.mxu0 0.0
        %705 = vmatpush1.msra.mxu0 %v668
        %706 = vmatprep.subr.mxu0 0.0
        %707 = vmatpush1.msra.mxu0 %v669
        %708 = vmatprep.subr.mxu0 0.0
        %709 = vmatpush1.msra.mxu0 %v670
        %710 = vmatprep.subr.mxu0 0.0
        %711 = vmatpush1.msra.mxu0 0.0
        %712 = vmatprep.subr.mxu0 0.0
        %713 = vmatpush1.msra.mxu0 0.0
        %714 = vmatprep.subr.mxu0 0.0
        %715 = vmatpush1.msra.mxu0 0.0
        %716 = vmatprep.subr.mxu0 0.0
        %717 = vmatpush1.msra.mxu0 0.0
        %718 = vmatprep.subr.mxu0 0.0
        %719 = vmatpush1.msra.mxu0 0.0
        %720 = vmatprep.subr.mxu0 0.0
        %721 = vmatpush1.msra.mxu0 0.0
        %722 = vmatprep.subr.mxu0 0.0
        %723 = vmatpush1.msra.mxu0 0.0
        %724 = vmatprep.subr.mxu0 0.0
        %725 = vmatpush1.msra.mxu0 0.0
        %726 = vmatprep.subr.mxu0 0.0
        %727 = vmatpush1.msra.mxu0 0.0
        %728 = vmatprep.subr.mxu0 0.0
        %729 = vmatpush1.msra.mxu0 0.0
        %730 = vmatprep.subr.mxu0 0.0
        %731 = vmatpush1.msra.mxu0 0.0
        %732 = vmatprep.subr.mxu0 0.0
        %733 = vmatpush1.msra.mxu0 0.0
        %734 = vmatprep.subr.mxu0 0.0
        %735 = vmatpush1.msra.mxu0 0.0
        %736 = vmatprep.subr.mxu0 0.0
        %737 = vmatpush1.msra.mxu0 0.0
        %738 = vmatprep.subr.mxu0 0.0
        %739 = vmatpush1.msra.mxu0 0.0
        %740 = vmatprep.subr.mxu0 0.0
        %741 = vmatpush1.msra.mxu0 0.0
        %742 = vmatprep.mubr.f32.mxu0 0.0
        %743 = vmatmul.mubr.f32.gmra.mrb[0].mxu0 %v623
        %v744 = vpop.f32.mrb[0].mxu0
        %v745 = vadd.f32 %v676, %v744
        %v746 = vpop.f32.mrb[0].mxu0
        %747 = vmatprep.mubr.f32.mxu0 0.0
        %748 = vmatmul.mubr.f32.gmra.mrb[0].mxu0 %v624
        %v749 = vpop.f32.mrb[0].mxu0
        %v750 = vadd.f32 %v676, %v749
        %v751 = vpop.f32.mrb[0].mxu0
        %752 = vmatprep.mubr.f32.mxu0 0.0
        %753 = vmatmul.mubr.f32.gmra.mrb[0].mxu0 %v625
        %v754 = vpop.f32.mrb[0].mxu0
        %v755 = vadd.f32 %v676, %v754
        %v756 = vpop.f32.mrb[0].mxu0
        %757 = vmatprep.mubr.f32.mxu0 0.0
        %758 = vmatmul.mubr.f32.gmra.mrb[0].mxu0 %v626
        %v759 = vpop.f32.mrb[0].mxu0
        %v760 = vadd.f32 %v676, %v759
        %v761 = vpop.f32.mrb[0].mxu0
        %762 = vmatprep.mubr.f32.mxu0 0.0
        %763 = vmatmul.mubr.f32.gmra.mrb[0].mxu0 %v627
        %v764 = vpop.f32.mrb[0].mxu0
        %v765 = vadd.f32 %v676, %v764
        %v766 = vpop.f32.mrb[0].mxu0
        %767 = vmatprep.mubr.f32.mxu0 0.0
        %768 = vmatmul.mubr.f32.gmra.mrb[0].mxu0 %v628
        %v769 = vpop.f32.mrb[0].mxu0
        %v770 = vadd.f32 %v676, %v769
        %v771 = vpop.f32.mrb[0].mxu0
        %772 = vmatprep.mubr.f32.mxu0 0.0
        %773 = vmatmul.mubr.f32.gmra.mrb[0].mxu0 %v629
        %v774 = vpop.f32.mrb[0].mxu0
        %v775 = vadd.f32 %v676, %v774
        %v776 = vpop.f32.mrb[0].mxu0
        %777 = vmatprep.mubr.f32.mxu0 0.0
        %778 = vmatmul.mubr.f32.gmra.mrb[0].mxu0 %v630
        %v779 = vpop.f32.mrb[0].mxu0
        %v780 = vadd.f32 %v676, %v779
        %v781 = vpop.f32.mrb[0].mxu0
        %782 = vmatprep.mubr.f32.mxu0 0.0
        %783 = vmatmul.mubr.f32.gmra.mrb[0].mxu0 %v631
        %v784 = vpop.f32.mrb[0].mxu0
        %v785 = vadd.f32 %v676, %v784
        %v786 = vpop.f32.mrb[0].mxu0
        %787 = vmatprep.mubr.f32.mxu0 0.0
        %788 = vmatmul.mubr.f32.gmra.mrb[0].mxu0 %v632
        %v789 = vpop.f32.mrb[0].mxu0
        %v790 = vadd.f32 %v676, %v789
        %v791 = vpop.f32.mrb[0].mxu0
        %792 = vmatprep.mubr.f32.mxu0 0.0
        %793 = vmatmul.mubr.f32.gmra.mrb[0].mxu0 %v633
        %v794 = vpop.f32.mrb[0].mxu0
        %v795 = vadd.f32 %v676, %v794
        %v796 = vpop.f32.mrb[0].mxu0
        %797 = vmatprep.mubr.f32.mxu0 0.0
        %798 = vmatmul.mubr.f32.gmra.mrb[0].mxu0 %v634
        %v799 = vpop.f32.mrb[0].mxu0
        %v800 = vadd.f32 %v676, %v799
        %v801 = vpop.f32.mrb[0].mxu0
        %802 = vmatprep.mubr.f32.mxu0 0.0
        %803 = vmatmul.mubr.f32.gmra.mrb[0].mxu0 %v635
        %v804 = vpop.f32.mrb[0].mxu0
        %v805 = vadd.f32 %v676, %v804
        %v806 = vpop.f32.mrb[0].mxu0
        %807 = vmatprep.mubr.f32.mxu0 0.0
        %808 = vmatmul.mubr.f32.gmra.mrb[0].mxu0 %v636
        %v809 = vpop.f32.mrb[0].mxu0
        %v810 = vadd.f32 %v676, %v809
        %v811 = vpop.f32.mrb[0].mxu0
        %812 = vmatprep.mubr.f32.mxu0 0.0
        %813 = vmatmul.mubr.f32.gmra.mrb[0].mxu0 %v637
        %v814 = vpop.f32.mrb[0].mxu0
        %v815 = vadd.f32 %v676, %v814
        %v816 = vpop.f32.mrb[0].mxu0
        %817 = vmatprep.mubr.f32.mxu0 0.0
        %818 = vmatmul.mubr.f32.gmra.mrb[0].mxu0 %v638
        %v819 = vpop.f32.mrb[0].mxu0
        %v820 = vadd.f32 %v676, %v819
        %v821 = vpop.f32.mrb[0].mxu0
        %822 = vmatprep.mubr.f32.mxu0 0.0
        %823 = vmatmul.mubr.f32.gmra.mrb[0].mxu0 %v639
        %v824 = vpop.f32.mrb[0].mxu0
        %v825 = vadd.f32 %v676, %v824
        %v826 = vpop.f32.mrb[0].mxu0
        %827 = vmatprep.mubr.f32.mxu0 0.0
        %828 = vmatmul.mubr.f32.gmra.mrb[0].mxu0 %v640
        %v829 = vpop.f32.mrb[0].mxu0
        %v830 = vadd.f32 %v676, %v829
        %v831 = vpop.f32.mrb[0].mxu0
        %832 = vmatprep.mubr.f32.mxu0 0.0
        %833 = vmatmul.mubr.f32.gmra.mrb[0].mxu0 %v641
        %v834 = vpop.f32.mrb[0].mxu0
        %v835 = vadd.f32 %v676, %v834
        %v836 = vpop.f32.mrb[0].mxu0
        %837 = vmatprep.mubr.f32.mxu0 0.0
        %838 = vmatmul.mubr.f32.gmra.mrb[0].mxu0 %v642
        %v839 = vpop.f32.mrb[0].mxu0
        %v840 = vadd.f32 %v676, %v839
        %v841 = vpop.f32.mrb[0].mxu0
        %842 = vmatprep.mubr.f32.mxu0 0.0
        %843 = vmatmul.mubr.f32.gmra.mrb[0].mxu0 %v643
        %v844 = vpop.f32.mrb[0].mxu0
        %v845 = vadd.f32 %v676, %v844
        %v846 = vpop.f32.mrb[0].mxu0
        %847 = vmatprep.mubr.f32.mxu0 0.0
        %848 = vmatmul.mubr.f32.gmra.mrb[0].mxu0 %v644
        %v849 = vpop.f32.mrb[0].mxu0
        %v850 = vadd.f32 %v676, %v849
        %v851 = vpop.f32.mrb[0].mxu0
        %852 = vmatprep.mubr.f32.mxu0 0.0
        %853 = vmatmul.mubr.f32.gmra.mrb[0].mxu0 %v645
        %v854 = vpop.f32.mrb[0].mxu0
        %v855 = vadd.f32 %v676, %v854
        %v856 = vpop.f32.mrb[0].mxu0
        %857 = vmatprep.mubr.f32.mxu0 0.0
        %858 = vmatmul.mubr.f32.gmra.mrb[0].mxu0 %v646
        %v859 = vpop.f32.mrb[0].mxu0
        %v860 = vadd.f32 %v676, %v859
        %v861 = vpop.f32.mrb[0].mxu0
        %862 = vmatprep.mubr.f32.mxu0 0.0
        %863 = vmatmul.mubr.f32.gmra.mrb[0].mxu0 %v647
        %v864 = vpop.f32.mrb[0].mxu0
        %v865 = vadd.f32 %v676, %v864
        %v866 = vpop.f32.mrb[0].mxu0
        %867 = vmatprep.mubr.f32.mxu0 0.0
        %868 = vmatmul.mubr.f32.gmra.mrb[0].mxu0 %v648
        %v869 = vpop.f32.mrb[0].mxu0
        %v870 = vadd.f32 %v676, %v869
        %v871 = vpop.f32.mrb[0].mxu0
        %872 = vmatprep.mubr.f32.mxu0 0.0
        %873 = vmatmul.mubr.f32.gmra.mrb[0].mxu0 %v649
        %v874 = vpop.f32.mrb[0].mxu0
        %v875 = vadd.f32 %v676, %v874
        %v876 = vpop.f32.mrb[0].mxu0
        %877 = vmatprep.mubr.f32.mxu0 0.0
        %878 = vmatmul.mubr.f32.gmra.mrb[0].mxu0 %v650
        %v879 = vpop.f32.mrb[0].mxu0
        %v880 = vadd.f32 %v676, %v879
        %v881 = vpop.f32.mrb[0].mxu0
        %882 = vmatprep.mubr.f32.mxu0 0.0
        %883 = vmatmul.mubr.f32.gmra.mrb[0].mxu0 %v651
        %v884 = vpop.f32.mrb[0].mxu0
        %v885 = vadd.f32 %v676, %v884
        %v886 = vpop.f32.mrb[0].mxu0
        %887 = vmatprep.mubr.f32.mxu0 0.0
        %888 = vmatmul.mubr.f32.gmra.mrb[0].mxu0 %v652
        %v889 = vpop.f32.mrb[0].mxu0
        %v890 = vadd.f32 %v676, %v889
        %v891 = vpop.f32.mrb[0].mxu0
        %892 = vmatprep.mubr.f32.mxu0 0.0
        %893 = vmatmul.mubr.f32.gmra.mrb[0].mxu0 %v653
        %v894 = vpop.f32.mrb[0].mxu0
        %v895 = vadd.f32 %v676, %v894
        %v896 = vpop.f32.mrb[0].mxu0
        %897 = vmatprep.mubr.f32.mxu0 0.0
        %898 = vmatmul.mubr.f32.gmra.mrb[0].mxu0 %v654
        %v899 = vpop.f32.mrb[0].mxu0
        %v900 = vadd.f32 %v676, %v899
        %v901 = vpop.f32.mrb[0].mxu0
        %902 = vdwg.mxu0
        %v903 = vmax.f32 %v745, 0.0
        %v904 = vmax.f32 %v750, 0.0
        %v905 = vmax.f32 %v755, 0.0
        %v906 = vmax.f32 %v760, 0.0
        %v907 = vmax.f32 %v765, 0.0
        %v908 = vmax.f32 %v770, 0.0
        %v909 = vmax.f32 %v775, 0.0
        %v910 = vmax.f32 %v780, 0.0
        %v911 = vmax.f32 %v785, 0.0
        %v912 = vmax.f32 %v790, 0.0
        %v913 = vmax.f32 %v795, 0.0
        %v914 = vmax.f32 %v800, 0.0
        %v915 = vmax.f32 %v805, 0.0
        %v916 = vmax.f32 %v810, 0.0
        %v917 = vmax.f32 %v815, 0.0
        %v918 = vmax.f32 %v820, 0.0
        %v919 = vmax.f32 %v825, 0.0
        %v920 = vmax.f32 %v830, 0.0
        %v921 = vmax.f32 %v835, 0.0
        %v922 = vmax.f32 %v840, 0.0
        %v923 = vmax.f32 %v845, 0.0
        %v924 = vmax.f32 %v850, 0.0
        %v925 = vmax.f32 %v855, 0.0
        %v926 = vmax.f32 %v860, 0.0
        %v927 = vmax.f32 %v865, 0.0
        %v928 = vmax.f32 %v870, 0.0
        %v929 = vmax.f32 %v875, 0.0
        %v930 = vmax.f32 %v880, 0.0
        %v931 = vmax.f32 %v885, 0.0
        %v932 = vmax.f32 %v890, 0.0
        %v933 = vmax.f32 %v895, 0.0
        %v934 = vmax.f32 %v900, 0.0
        %v935 = vld [vmem:[#allocation8] sm:$0xff]
        %v936 = vld [vmem:[#allocation8 + $0x8] sm:$0xff]
        %v937 = vld [vmem:[#allocation8 + $0x10] sm:$0xff]
        %v938 = vld [vmem:[#allocation8 + $0x18] sm:$0xff]
        %v939 = vld [vmem:[#allocation8 + $0x20] sm:$0xff]
        %v940 = vld [vmem:[#allocation8 + $0x28] sm:$0xff]
        %v941 = vld [vmem:[#allocation8 + $0x30] sm:$0xff]
        %v942 = vld [vmem:[#allocation8 + $0x38] sm:$0xff]
        %v943 = vld [vmem:[#allocation8 + $0x40] sm:$0xff]
        %v944 = vld [vmem:[#allocation8 + $0x48] sm:$0xff]
        %v945 = vld [vmem:[#allocation8 + $0x50] sm:$0xff]
        %v946 = vld [vmem:[#allocation8 + $0x58] sm:$0xff]
        %v947 = vld [vmem:[#allocation8 + $0x60] sm:$0xff]
        %v948 = vld [vmem:[#allocation8 + $0x68] sm:$0xff]
        %v949 = vld [vmem:[#allocation8 + $0x70] sm:$0xff]
        %v950 = vld [vmem:[#allocation8 + $0x78] sm:$0xff]
        %v951 = vld [vmem:[%s6] sm:$0x1]
        %v953 = vlaneseq
        %v954 = vshrl.u32 %v953, 7
        %v955 = vsub.s32 0, %v954
        %v956 = vrot.slane %v951, %v955
        %958 = vmatprep.subr.mxu0 0.0
        %959 = vmatpush1.msra.mxu0 %v935
        %960 = vmatprep.subr.mxu0 0.0
        %961 = vmatpush1.msra.mxu0 %v936
        %962 = vmatprep.subr.mxu0 0.0
        %963 = vmatpush1.msra.mxu0 %v937
        %964 = vmatprep.subr.mxu0 0.0
        %965 = vmatpush1.msra.mxu0 %v938
        %966 = vmatprep.subr.mxu0 0.0
        %967 = vmatpush1.msra.mxu0 %v939
        %968 = vmatprep.subr.mxu0 0.0
        %969 = vmatpush1.msra.mxu0 %v940
        %970 = vmatprep.subr.mxu0 0.0
        %971 = vmatpush1.msra.mxu0 %v941
        %972 = vmatprep.subr.mxu0 0.0
        %973 = vmatpush1.msra.mxu0 %v942
        %974 = vmatprep.subr.mxu0 0.0
        %975 = vmatpush1.msra.mxu0 %v943
        %976 = vmatprep.subr.mxu0 0.0
        %977 = vmatpush1.msra.mxu0 %v944
        %978 = vmatprep.subr.mxu0 0.0
        %979 = vmatpush1.msra.mxu0 %v945
        %980 = vmatprep.subr.mxu0 0.0
        %981 = vmatpush1.msra.mxu0 %v946
        %982 = vmatprep.subr.mxu0 0.0
        %983 = vmatpush1.msra.mxu0 %v947
        %984 = vmatprep.subr.mxu0 0.0
        %985 = vmatpush1.msra.mxu0 %v948
        %986 = vmatprep.subr.mxu0 0.0
        %987 = vmatpush1.msra.mxu0 %v949
        %988 = vmatprep.subr.mxu0 0.0
        %989 = vmatpush1.msra.mxu0 %v950
        %990 = vmatprep.subr.mxu0 0.0
        %991 = vmatpush1.msra.mxu0 0.0
        %992 = vmatprep.subr.mxu0 0.0
        %993 = vmatpush1.msra.mxu0 0.0
        %994 = vmatprep.subr.mxu0 0.0
        %995 = vmatpush1.msra.mxu0 0.0
        %996 = vmatprep.subr.mxu0 0.0
        %997 = vmatpush1.msra.mxu0 0.0
        %998 = vmatprep.subr.mxu0 0.0
        %999 = vmatpush1.msra.mxu0 0.0
        %1000 = vmatprep.subr.mxu0 0.0
        %1001 = vmatpush1.msra.mxu0 0.0
        %1002 = vmatprep.subr.mxu0 0.0
        %1003 = vmatpush1.msra.mxu0 0.0
        %1004 = vmatprep.subr.mxu0 0.0
        %1005 = vmatpush1.msra.mxu0 0.0
        %1006 = vmatprep.subr.mxu0 0.0
        %1007 = vmatpush1.msra.mxu0 0.0
        %1008 = vmatprep.subr.mxu0 0.0
        %1009 = vmatpush1.msra.mxu0 0.0
        %1010 = vmatprep.subr.mxu0 0.0
        %1011 = vmatpush1.msra.mxu0 0.0
        %1012 = vmatprep.subr.mxu0 0.0
        %1013 = vmatpush1.msra.mxu0 0.0
        %1014 = vmatprep.subr.mxu0 0.0
        %1015 = vmatpush1.msra.mxu0 0.0
        %1016 = vmatprep.subr.mxu0 0.0
        %1017 = vmatpush1.msra.mxu0 0.0
        %1018 = vmatprep.subr.mxu0 0.0
        %1019 = vmatpush1.msra.mxu0 0.0
        %1020 = vmatprep.subr.mxu0 0.0
        %1021 = vmatpush1.msra.mxu0 0.0
        %1022 = vmatprep.mubr.f32.mxu0 0.0
        %1023 = vmatmul.mubr.f32.gmra.mrb[0].mxu0 %v903
        %v1024 = vpop.f32.mrb[0].mxu0
        %v1025 = vadd.f32 %v956, %v1024
        %v1026 = vpop.f32.mrb[0].mxu0
        %1027 = vmatprep.mubr.f32.mxu0 0.0
        %1028 = vmatmul.mubr.f32.gmra.mrb[0].mxu0 %v904
        %v1029 = vpop.f32.mrb[0].mxu0
        %v1030 = vadd.f32 %v956, %v1029
        %v1031 = vpop.f32.mrb[0].mxu0
        %1032 = vmatprep.mubr.f32.mxu0 0.0
        %1033 = vmatmul.mubr.f32.gmra.mrb[0].mxu0 %v905
        %v1034 = vpop.f32.mrb[0].mxu0
        %v1035 = vadd.f32 %v956, %v1034
        %v1036 = vpop.f32.mrb[0].mxu0
        %1037 = vmatprep.mubr.f32.mxu0 0.0
        %1038 = vmatmul.mubr.f32.gmra.mrb[0].mxu0 %v906
        %v1039 = vpop.f32.mrb[0].mxu0
        %v1040 = vadd.f32 %v956, %v1039
        %v1041 = vpop.f32.mrb[0].mxu0
        %1042 = vmatprep.mubr.f32.mxu0 0.0
        %1043 = vmatmul.mubr.f32.gmra.mrb[0].mxu0 %v907
        %v1044 = vpop.f32.mrb[0].mxu0
        %v1045 = vadd.f32 %v956, %v1044
        %v1046 = vpop.f32.mrb[0].mxu0
        %1047 = vmatprep.mubr.f32.mxu0 0.0
        %1048 = vmatmul.mubr.f32.gmra.mrb[0].mxu0 %v908
        %v1049 = vpop.f32.mrb[0].mxu0
        %v1050 = vadd.f32 %v956, %v1049
        %v1051 = vpop.f32.mrb[0].mxu0
        %1052 = vmatprep.mubr.f32.mxu0 0.0
        %1053 = vmatmul.mubr.f32.gmra.mrb[0].mxu0 %v909
        %v1054 = vpop.f32.mrb[0].mxu0
        %v1055 = vadd.f32 %v956, %v1054
        %v1056 = vpop.f32.mrb[0].mxu0
        %1057 = vmatprep.mubr.f32.mxu0 0.0
        %1058 = vmatmul.mubr.f32.gmra.mrb[0].mxu0 %v910
        %v1059 = vpop.f32.mrb[0].mxu0
        %v1060 = vadd.f32 %v956, %v1059
        %v1061 = vpop.f32.mrb[0].mxu0
        %1062 = vmatprep.mubr.f32.mxu0 0.0
        %1063 = vmatmul.mubr.f32.gmra.mrb[0].mxu0 %v911
        %v1064 = vpop.f32.mrb[0].mxu0
        %v1065 = vadd.f32 %v956, %v1064
        %v1066 = vpop.f32.mrb[0].mxu0
        %1067 = vmatprep.mubr.f32.mxu0 0.0
        %1068 = vmatmul.mubr.f32.gmra.mrb[0].mxu0 %v912
        %v1069 = vpop.f32.mrb[0].mxu0
        %v1070 = vadd.f32 %v956, %v1069
        %v1071 = vpop.f32.mrb[0].mxu0
        %1072 = vmatprep.mubr.f32.mxu0 0.0
        %1073 = vmatmul.mubr.f32.gmra.mrb[0].mxu0 %v913
        %v1074 = vpop.f32.mrb[0].mxu0
        %v1075 = vadd.f32 %v956, %v1074
        %v1076 = vpop.f32.mrb[0].mxu0
        %1077 = vmatprep.mubr.f32.mxu0 0.0
        %1078 = vmatmul.mubr.f32.gmra.mrb[0].mxu0 %v914
        %v1079 = vpop.f32.mrb[0].mxu0
        %v1080 = vadd.f32 %v956, %v1079
        %v1081 = vpop.f32.mrb[0].mxu0
        %1082 = vmatprep.mubr.f32.mxu0 0.0
        %1083 = vmatmul.mubr.f32.gmra.mrb[0].mxu0 %v915
        %v1084 = vpop.f32.mrb[0].mxu0
        %v1085 = vadd.f32 %v956, %v1084
        %v1086 = vpop.f32.mrb[0].mxu0
        %1087 = vmatprep.mubr.f32.mxu0 0.0
        %1088 = vmatmul.mubr.f32.gmra.mrb[0].mxu0 %v916
        %v1089 = vpop.f32.mrb[0].mxu0
        %v1090 = vadd.f32 %v956, %v1089
        %v1091 = vpop.f32.mrb[0].mxu0
        %1092 = vmatprep.mubr.f32.mxu0 0.0
        %1093 = vmatmul.mubr.f32.gmra.mrb[0].mxu0 %v917
        %v1094 = vpop.f32.mrb[0].mxu0
        %v1095 = vadd.f32 %v956, %v1094
        %v1096 = vpop.f32.mrb[0].mxu0
        %1097 = vmatprep.mubr.f32.mxu0 0.0
        %1098 = vmatmul.mubr.f32.gmra.mrb[0].mxu0 %v918
        %v1099 = vpop.f32.mrb[0].mxu0
        %v1100 = vadd.f32 %v956, %v1099
        %v1101 = vpop.f32.mrb[0].mxu0
        %1102 = vmatprep.mubr.f32.mxu0 0.0
        %1103 = vmatmul.mubr.f32.gmra.mrb[0].mxu0 %v919
        %v1104 = vpop.f32.mrb[0].mxu0
        %v1105 = vadd.f32 %v956, %v1104
        %v1106 = vpop.f32.mrb[0].mxu0
        %1107 = vmatprep.mubr.f32.mxu0 0.0
        %1108 = vmatmul.mubr.f32.gmra.mrb[0].mxu0 %v920
        %v1109 = vpop.f32.mrb[0].mxu0
        %v1110 = vadd.f32 %v956, %v1109
        %v1111 = vpop.f32.mrb[0].mxu0
        %1112 = vmatprep.mubr.f32.mxu0 0.0
        %1113 = vmatmul.mubr.f32.gmra.mrb[0].mxu0 %v921
        %v1114 = vpop.f32.mrb[0].mxu0
        %v1115 = vadd.f32 %v956, %v1114
        %v1116 = vpop.f32.mrb[0].mxu0
        %1117 = vmatprep.mubr.f32.mxu0 0.0
        %1118 = vmatmul.mubr.f32.gmra.mrb[0].mxu0 %v922
        %v1119 = vpop.f32.mrb[0].mxu0
        %v1120 = vadd.f32 %v956, %v1119
        %v1121 = vpop.f32.mrb[0].mxu0
        %1122 = vmatprep.mubr.f32.mxu0 0.0
        %1123 = vmatmul.mubr.f32.gmra.mrb[0].mxu0 %v923
        %v1124 = vpop.f32.mrb[0].mxu0
        %v1125 = vadd.f32 %v956, %v1124
        %v1126 = vpop.f32.mrb[0].mxu0
        %1127 = vmatprep.mubr.f32.mxu0 0.0
        %1128 = vmatmul.mubr.f32.gmra.mrb[0].mxu0 %v924
        %v1129 = vpop.f32.mrb[0].mxu0
        %v1130 = vadd.f32 %v956, %v1129
        %v1131 = vpop.f32.mrb[0].mxu0
        %1132 = vmatprep.mubr.f32.mxu0 0.0
        %1133 = vmatmul.mubr.f32.gmra.mrb[0].mxu0 %v925
        %v1134 = vpop.f32.mrb[0].mxu0
        %v1135 = vadd.f32 %v956, %v1134
        %v1136 = vpop.f32.mrb[0].mxu0
        %1137 = vmatprep.mubr.f32.mxu0 0.0
        %1138 = vmatmul.mubr.f32.gmra.mrb[0].mxu0 %v926
        %v1139 = vpop.f32.mrb[0].mxu0
        %v1140 = vadd.f32 %v956, %v1139
        %v1141 = vpop.f32.mrb[0].mxu0
        %1142 = vmatprep.mubr.f32.mxu0 0.0
        %1143 = vmatmul.mubr.f32.gmra.mrb[0].mxu0 %v927
        %v1144 = vpop.f32.mrb[0].mxu0
        %v1145 = vadd.f32 %v956, %v1144
        %v1146 = vpop.f32.mrb[0].mxu0
        %1147 = vmatprep.mubr.f32.mxu0 0.0
        %1148 = vmatmul.mubr.f32.gmra.mrb[0].mxu0 %v928
        %v1149 = vpop.f32.mrb[0].mxu0
        %v1150 = vadd.f32 %v956, %v1149
        %v1151 = vpop.f32.mrb[0].mxu0
        %1152 = vmatprep.mubr.f32.mxu0 0.0
        %1153 = vmatmul.mubr.f32.gmra.mrb[0].mxu0 %v929
        %v1154 = vpop.f32.mrb[0].mxu0
        %v1155 = vadd.f32 %v956, %v1154
        %v1156 = vpop.f32.mrb[0].mxu0
        %1157 = vmatprep.mubr.f32.mxu0 0.0
        %1158 = vmatmul.mubr.f32.gmra.mrb[0].mxu0 %v930
        %v1159 = vpop.f32.mrb[0].mxu0
        %v1160 = vadd.f32 %v956, %v1159
        %v1161 = vpop.f32.mrb[0].mxu0
        %1162 = vmatprep.mubr.f32.mxu0 0.0
        %1163 = vmatmul.mubr.f32.gmra.mrb[0].mxu0 %v931
        %v1164 = vpop.f32.mrb[0].mxu0
        %v1165 = vadd.f32 %v956, %v1164
        %v1166 = vpop.f32.mrb[0].mxu0
        %1167 = vmatprep.mubr.f32.mxu0 0.0
        %1168 = vmatmul.mubr.f32.gmra.mrb[0].mxu0 %v932
        %v1169 = vpop.f32.mrb[0].mxu0
        %v1170 = vadd.f32 %v956, %v1169
        %v1171 = vpop.f32.mrb[0].mxu0
        %1172 = vmatprep.mubr.f32.mxu0 0.0
        %1173 = vmatmul.mubr.f32.gmra.mrb[0].mxu0 %v933
        %v1174 = vpop.f32.mrb[0].mxu0
        %v1175 = vadd.f32 %v956, %v1174
        %v1176 = vpop.f32.mrb[0].mxu0
        %1177 = vmatprep.mubr.f32.mxu0 0.0
        %1178 = vmatmul.mubr.f32.gmra.mrb[0].mxu0 %v934
        %v1179 = vpop.f32.mrb[0].mxu0
        %v1180 = vadd.f32 %v956, %v1179
        %v1181 = vpop.f32.mrb[0].mxu0
        %1182 = vdwg.mxu0
        %1183 = vst [vmem:[%s340] sm:$0xff] %v1025
        %1184 = vst [vmem:[%s340 + $0x8] sm:$0xff] %v1030
        %1185 = vst [vmem:[%s340 + $0x10] sm:$0xff] %v1035
        %1186 = vst [vmem:[%s340 + $0x18] sm:$0xff] %v1040
        %1187 = vst [vmem:[%s340 + $0x20] sm:$0xff] %v1045
        %1188 = vst [vmem:[%s340 + $0x28] sm:$0xff] %v1050
        %1189 = vst [vmem:[%s340 + $0x30] sm:$0xff] %v1055
        %1190 = vst [vmem:[%s340 + $0x38] sm:$0xff] %v1060
        %1191 = vst [vmem:[%s340 + $0x40] sm:$0xff] %v1065
        %1192 = vst [vmem:[%s340 + $0x48] sm:$0xff] %v1070
        %1193 = vst [vmem:[%s340 + $0x50] sm:$0xff] %v1075
        %1194 = vst [vmem:[%s340 + $0x58] sm:$0xff] %v1080
        %1195 = vst [vmem:[%s340 + $0x60] sm:$0xff] %v1085
        %1196 = vst [vmem:[%s340 + $0x68] sm:$0xff] %v1090
        %1197 = vst [vmem:[%s340 + $0x70] sm:$0xff] %v1095
        %1198 = vst [vmem:[%s340 + $0x78] sm:$0xff] %v1100
        %1199 = vst [vmem:[%s340 + $0x80] sm:$0xff] %v1105
        %1200 = vst [vmem:[%s340 + $0x88] sm:$0xff] %v1110
        %1201 = vst [vmem:[%s340 + $0x90] sm:$0xff] %v1115
        %1202 = vst [vmem:[%s340 + $0x98] sm:$0xff] %v1120
        %1203 = vst [vmem:[%s340 + $0xa0] sm:$0xff] %v1125
        %1204 = vst [vmem:[%s340 + $0xa8] sm:$0xff] %v1130
        %1205 = vst [vmem:[%s340 + $0xb0] sm:$0xff] %v1135
        %1206 = vst [vmem:[%s340 + $0xb8] sm:$0xff] %v1140
        %1207 = vst [vmem:[%s340 + $0xc0] sm:$0xff] %v1145
        %1208 = vst [vmem:[%s340 + $0xc8] sm:$0xff] %v1150
        %1209 = vst [vmem:[%s340 + $0xd0] sm:$0xff] %v1155
        %1210 = vst [vmem:[%s340 + $0xd8] sm:$0xff] %v1160
        %1211 = vst [vmem:[%s340 + $0xe0] sm:$0xff] %v1165
        %1212 = vst [vmem:[%s340 + $0xe8] sm:$0xff] %v1170
        %1213 = vst [vmem:[%s340 + $0xf0] sm:$0xff] %v1175
        %1214 = vst [vmem:[%s340 + $0xf8] sm:$0xff] %v1180
        %s1215 = sand.u32 %s186, 1
        %s1216 = scalar_lea.sflag [#allocation4], %s1215
        %s1217 = sand.u32 %s186, 1
        %s1218 = smul.addr %s1217, 256
        %s1219 = scalar_lea.vmem [#allocation10], %s1218
        // Predicated region
        $region65: #{tpu_custom_call.1} parent=47 // pred_check
          %p1220 = pneg %p196
        $region66: #{tpu_custom_call.1} parent=47 // pred_check_branch
          %1222 = sbr.rel (%p1220) target = $region68
        $region67: #{tpu_custom_call.1} parent=47 // pred_region
          %s1223 = smul.u32 32, %s26
          %s1225 = ssub.s32 4096, 4096
          %1226 = vsyncadd %s1216, %s1225
          %s1227 = smul.addr %s1223, 128
          %s1228 = scalar_lea.hbm %s7, %s1227
          %s1229 = sshll.u32 %s1219, 4
          %s1230 = int_to_ptr.vmem [resolvable:$true] %s1229
          %1235 = dma.vmem_to_hbm [thread:$0]  %s1230, 4096, %s1228, %s1216, 128, 128, 8
        $region68: #{tpu_custom_call.1} parent=47 // pred_fallthru
          _
      $region48: #{tpu_custom_call.1} parent=5 // pred_fallthru
        _
      %p1236 = scmp.le.s32.totalorder 2, %s21
      // Predicated region
      $region69: #{tpu_custom_call.1} parent=5 // pred_check
        %p1237 = pneg %p1236
      $region70: #{tpu_custom_call.1} parent=5 // pred_check_branch
        %1239 = sbr.rel (%p1237) target = $region72
      $region71: #{tpu_custom_call.1} parent=5 // pred_region
        %s1240 = ssub.s32 %s21, 2
        // Predicated region
        $region73: #{tpu_custom_call.1} parent=71 // pred_check
          %p1241 = pneg %p202
        $region74: #{tpu_custom_call.1} parent=71 // pred_check_branch
          %1243 = sbr.rel (%p1241) target = $region76
        $region75: #{tpu_custom_call.1} parent=71 // pred_region
          %s1244 = sand.u32 %s187, 1
          %s1245 = scalar_lea.sflag [#allocation4], %s1244
          %s1246 = sand.u32 %s187, 1
          %s1247 = smul.addr %s1246, 256
          %s1248 = scalar_lea.vmem [#allocation10], %s1247
          %1249 = dma.done %s1245, 4096
        $region76: #{tpu_custom_call.1} parent=71 // pred_fallthru
          _
      $region72: #{tpu_custom_call.1} parent=5 // pred_fallthru
        _
    $region6: #{tpu_custom_call.1} parent=1 // loop_footer
      %s25 = sadd.s32 1, %s21
    $region7: #{tpu_custom_call.1} parent=1 // loop_footer_branch
      %20 = sbr.rel target = $region3
    $region8: #{tpu_custom_call.1} parent=1 // loop_exit
      _
    %1250 = vsyncpa [#allocation3], 1
    %s1251 = scalar_lea.sflag [#allocation3], 1
    %1252 = vsyncpa %s1251, 1
    %1253 = vsyncpa [#allocation6], 1
    %1254 = vsyncpa [#allocation9], 1
    %1255 = vsyncpa [#allocation4], 1
    %s1256 = scalar_lea.sflag [#allocation4], 1
    %1257 = vsyncpa %s1256, 1

// kernel: tpu_custom_call.1
$region0: #{tpu_custom_call.1}
  #allocation0 [shape = 'u32[]', space=smem, size = 0x4, offset = 0x4, fixed_abs, tag = 'smem constant byte address 0x4 - core index']
  #allocation1 [shape = 'u32[144,128]{1,0:T(1,128)}', space=vmem, size = 0x12000, scoped, tag = 'internal scratch']
  %s0 = inlined_call_operand.hbm [shape: f32[1024,128], index: 0, kind: input, shape index: {}]
  %s1 = inlined_call_operand.hbm [shape: f32[128,128], index: 1, kind: input, shape index: {}]
  %s2 = inlined_call_operand.vmem [shape: f32[1,128], index: 2, kind: input, shape index: {}]
  %s3 = inlined_call_operand.hbm [shape: f32[128,128], index: 3, kind: input, shape index: {}]
  %s4 = inlined_call_operand.vmem [shape: f32[1,128], index: 4, kind: input, shape index: {}]
  %s5 = inlined_call_operand.hbm [shape: f32[128,128], index: 5, kind: input, shape index: {}]
  %s6 = inlined_call_operand.vmem [shape: f32[1,128], index: 6, kind: input, shape index: {}]
  %s7 = inlined_call_operand.hbm [shape: f32[1024,128], index: 7, kind: output, shape index: {}]
  %s8 = sld [smem:[#allocation0]]
  $region77: #{tpu_custom_call.1} parent=0
    _
  %s10 = ssub.s32 1, %s8
  %s11 = scalar_select 0, %s10, %s8
  $region1: #{tpu_custom_call.1} parent=0
    #allocation2 [shape = 'u8[262144]{0}', space=vmem, size = 0x40000, scoped, tag = 'input window, operand 0']
    #allocation3 [shape = 's32[2]{0}', space=sflag, size = 0x8, scoped, tag = 'scoped memory for tpu_custom_call.1']
    #allocation4 [shape = 's32[2]{0}', space=sflag, size = 0x8, scoped, tag = 'scoped memory for tpu_custom_call.1']
    #allocation5 [shape = 'u8[65536]{0}', space=vmem, size = 0x10000, scoped, tag = 'input window, operand 1, single buffered']
    #allocation6 [shape = 's32[1]{0}', space=sflag, size = 0x4, scoped, tag = 'scoped memory for tpu_custom_call.1']
    #allocation7 [shape = 'u8[65536]{0}', space=vmem, size = 0x10000, scoped, tag = 'input window, operand 3, single buffered']
    #allocation8 [shape = 'u8[65536]{0}', space=vmem, size = 0x10000, scoped, tag = 'input window, operand 5, single buffered']
    #allocation9 [shape = 's32[1]{0}', space=sflag, size = 0x4, scoped, tag = 'scoped memory for tpu_custom_call.1']
    #allocation10 [shape = 'u8[262144]{0}', space=vmem, size = 0x40000, scoped, tag = 'output window, operand 0']
    %12 = vsyncpa [#allocation3], 0
    %s13 = scalar_lea.sflag [#allocation3], 1
    %14 = vsyncpa %s13, 0
    %15 = vsyncpa [#allocation6], 0
    %16 = vsyncpa [#allocation9], 0
    %17 = vsyncpa [#allocation4], 0
    %s18 = scalar_lea.sflag [#allocation4], 1
    %19 = vsyncpa %s18, 0
    loop: start=0, step=1, limit=6
    $region2: #{tpu_custom_call.1} parent=1 // loop_pre_header
      _
    $region3: #{tpu_custom_call.1} parent=1 // loop_header
      %s21 = sphi 0, %s25
      %p22 = scmp.ge.s32.totalorder %s21, 6
      %s31 = sphi 0, %s33
      %s34 = sphi 0, %s31
      %s35 = sphi 0, %s34
      %s51 = sphi 0, %s35
      %s55 = sphi 0, %s55
      %s57 = sphi 0, %s55
      %s58 = sphi 0, %s57
      %s72 = sphi 0, %s58
      %s76 = sphi 0, %s76
      %s78 = sphi 0, %s76
      %s79 = sphi 0, %s78
      %s93 = sphi 0, %s79
      %s97 = sphi 0, %s97
      %s99 = sphi 0, %s97
      %s100 = sphi 0, %s99
      %s114 = sphi 0, %s100
      %s118 = sphi 0, %s118
      %s120 = sphi 0, %s118
      %s121 = sphi 0, %s120
      %s135 = sphi 0, %s121
      %s139 = sphi 0, %s139
      %s141 = sphi 0, %s139
      %s142 = sphi 0, %s141
      %s156 = sphi 0, %s142
      %s160 = sphi 0, %s160
      %s162 = sphi 0, %s160
      %s163 = sphi 0, %s162
      %s177 = sphi 0, %s163
      %s183 = sphi 0, %s185
      %s186 = sphi 0, %s183
      %s187 = sphi 0, %s186
      %s203 = sphi 0, %s187
    $region4: #{tpu_custom_call.1} parent=1 // loop_header_branch
      %24 = sbr.rel (%p22) target = $region8
    $region5: #{tpu_custom_call.1} parent=1 // loop_body
      %s26 = ssub.s32 %s21, 1
      %s27 = ssub.s32 %s21, 2
      %s28 = sadd.s32 %s21, 1
      %s29 = ssub.s32 %s21, %s28
      %p30 = scmp.eq.s32.totalorder %s29, 0
      %s32 = sadd.s32 %s31, 1
      %s33 = scalar_select %p30, %s31, %s32
      %p36 = pneg %p30
      %p37 = scmp.eq.s32.totalorder %s21, 3
      %p38 = por %p36, %p37
      %p39 = scmp.ne.s32.totalorder %s31, %s34
      %p40 = scmp.eq.s32.totalorder %s21, 0
      %p41 = por %p39, %p40
      %p42 = scmp.ne.s32.totalorder %s31, %s34
      %p43 = scmp.eq.s32.totalorder %s26, 3
      %p44 = por %p42, %p43
      %p45 = scmp.ne.s32.totalorder %s34, %s35
      %p46 = scmp.eq.s32.totalorder %s26, 0
      %p47 = por %p45, %p46
      %p48 = scmp.ne.s32.totalorder %s34, %s35
      %p49 = scmp.eq.s32.totalorder %s27, 3
      %p50 = por %p48, %p49
      %p52 = scmp.ne.s32.totalorder %s35, %s51
      %p53 = scmp.eq.s32.totalorder %s27, 0
      %p54 = por %p52, %p53
      %s56 = sadd.s32 %s55, 1
      %p59 = scmp.eq.s32.totalorder %s21, 3
      %p60 = scmp.ne.s32.totalorder %s55, %s57
      %p61 = scmp.eq.s32.totalorder %s21, 0
      %p62 = por %p60, %p61
      %p63 = scmp.ne.s32.totalorder %s55, %s57
      %p64 = scmp.eq.s32.totalorder %s26, 3
      %p65 = por %p63, %p64
      %p66 = scmp.ne.s32.totalorder %s57, %s58
      %p67 = scmp.eq.s32.totalorder %s26, 0
      %p68 = por %p66, %p67
      %p69 = scmp.ne.s32.totalorder %s57, %s58
      %p70 = scmp.eq.s32.totalorder %s27, 3
      %p71 = por %p69, %p70
      %p73 = scmp.ne.s32.totalorder %s58, %s72
      %p74 = scmp.eq.s32.totalorder %s27, 0
      %p75 = por %p73, %p74
      %s77 = sadd.s32 %s76, 1
      %p80 = scmp.eq.s32.totalorder %s21, 3
      %p81 = scmp.ne.s32.totalorder %s76, %s78
      %p82 = scmp.eq.s32.totalorder %s21, 0
      %p83 = por %p81, %p82
      %p84 = scmp.ne.s32.totalorder %s76, %s78
      %p85 = scmp.eq.s32.totalorder %s26, 3
      %p86 = por %p84, %p85
      %p87 = scmp.ne.s32.totalorder %s78, %s79
      %p88 = scmp.eq.s32.totalorder %s26, 0
      %p89 = por %p87, %p88
      %p90 = scmp.ne.s32.totalorder %s78, %s79
      %p91 = scmp.eq.s32.totalorder %s27, 3
      %p92 = por %p90, %p91
      %p94 = scmp.ne.s32.totalorder %s79, %s93
      %p95 = scmp.eq.s32.totalorder %s27, 0
      %p96 = por %p94, %p95
      %s98 = sadd.s32 %s97, 1
      %p101 = scmp.eq.s32.totalorder %s21, 3
      %p102 = scmp.ne.s32.totalorder %s97, %s99
      %p103 = scmp.eq.s32.totalorder %s21, 0
      %p104 = por %p102, %p103
      %p105 = scmp.ne.s32.totalorder %s97, %s99
      %p106 = scmp.eq.s32.totalorder %s26, 3
      %p107 = por %p105, %p106
      %p108 = scmp.ne.s32.totalorder %s99, %s100
      %p109 = scmp.eq.s32.totalorder %s26, 0
      %p110 = por %p108, %p109
      %p111 = scmp.ne.s32.totalorder %s99, %s100
      %p112 = scmp.eq.s32.totalorder %s27, 3
      %p113 = por %p111, %p112
      %p115 = scmp.ne.s32.totalorder %s100, %s114
      %p116 = scmp.eq.s32.totalorder %s27, 0
      %p117 = por %p115, %p116
      %s119 = sadd.s32 %s118, 1
      %p122 = scmp.eq.s32.totalorder %s21, 3
      %p123 = scmp.ne.s32.totalorder %s118, %s120
      %p124 = scmp.eq.s32.totalorder %s21, 0
      %p125 = por %p123, %p124
      %p126 = scmp.ne.s32.totalorder %s118, %s120
      %p127 = scmp.eq.s32.totalorder %s26, 3
      %p128 = por %p126, %p127
      %p129 = scmp.ne.s32.totalorder %s120, %s121
      %p130 = scmp.eq.s32.totalorder %s26, 0
      %p131 = por %p129, %p130
      %p132 = scmp.ne.s32.totalorder %s120, %s121
      %p133 = scmp.eq.s32.totalorder %s27, 3
      %p134 = por %p132, %p133
      %p136 = scmp.ne.s32.totalorder %s121, %s135
      %p137 = scmp.eq.s32.totalorder %s27, 0
      %p138 = por %p136, %p137
      %s140 = sadd.s32 %s139, 1
      %p143 = scmp.eq.s32.totalorder %s21, 3
      %p144 = scmp.ne.s32.totalorder %s139, %s141
      %p145 = scmp.eq.s32.totalorder %s21, 0
      %p146 = por %p144, %p145
      %p147 = scmp.ne.s32.totalorder %s139, %s141
      %p148 = scmp.eq.s32.totalorder %s26, 3
      %p149 = por %p147, %p148
      %p150 = scmp.ne.s32.totalorder %s141, %s142
      %p151 = scmp.eq.s32.totalorder %s26, 0
      %p152 = por %p150, %p151
      %p153 = scmp.ne.s32.totalorder %s141, %s142
      %p154 = scmp.eq.s32.totalorder %s27, 3
      %p155 = por %p153, %p154
      %p157 = scmp.ne.s32.totalorder %s142, %s156
      %p158 = scmp.eq.s32.totalorder %s27, 0
      %p159 = por %p157, %p158
      %s161 = sadd.s32 %s160, 1
      %p164 = scmp.eq.s32.totalorder %s21, 3
      %p165 = scmp.ne.s32.totalorder %s160, %s162
      %p166 = scmp.eq.s32.totalorder %s21, 0
      %p167 = por %p165, %p166
      %p168 = scmp.ne.s32.totalorder %s160, %s162
      %p169 = scmp.eq.s32.totalorder %s26, 3
      %p170 = por %p168, %p169
      %p171 = scmp.ne.s32.totalorder %s162, %s163
      %p172 = scmp.eq.s32.totalorder %s26, 0
      %p173 = por %p171, %p172
      %p174 = scmp.ne.s32.totalorder %s162, %s163
      %p175 = scmp.eq.s32.totalorder %s27, 3
      %p176 = por %p174, %p175
      %p178 = scmp.ne.s32.totalorder %s163, %s177
      %p179 = scmp.eq.s32.totalorder %s27, 0
      %p180 = por %p178, %p179
      %s181 = ssub.s32 %s21, %s28
      %p182 = scmp.eq.s32.totalorder %s181, 0
      %s184 = sadd.s32 %s183, 1
      %s185 = scalar_select %p182, %s183, %s184
      %p188 = pneg %p182
      %p189 = scmp.eq.s32.totalorder %s21, 3
      %p190 = por %p188, %p189
      %p191 = scmp.ne.s32.totalorder %s183, %s186
      %p192 = scmp.eq.s32.totalorder %s21, 0
      %p193 = por %p191, %p192
      %p194 = scmp.ne.s32.totalorder %s183, %s186
      %p195 = scmp.eq.s32.totalorder %s26, 3
      %p196 = por %p194, %p195
      %p197 = scmp.ne.s32.totalorder %s186, %s187
      %p198 = scmp.eq.s32.totalorder %s26, 0
      %p199 = por %p197, %p198
      %p200 = scmp.ne.s32.totalorder %s186, %s187
      %p201 = scmp.eq.s32.totalorder %s27, 3
      %p202 = por %p200, %p201
      %p204 = scmp.ne.s32.totalorder %s187, %s203
      %p205 = scmp.eq.s32.totalorder %s27, 0
      %p206 = por %p204, %p205
      %p207 = scmp.le.s32.totalorder 1, %s21
      %p208 = scmp.lt.s32.totalorder %s21, 5
      %p209 = pnand %p207, %p208
      %p210 = pneg %p209
      // Predicated region
      $region9: #{tpu_custom_call.1} parent=5 // pred_check
        _
      $region10: #{tpu_custom_call.1} parent=5 // pred_check_branch
        %212 = sbr.rel (%p209) target = $region12
      $region11: #{tpu_custom_call.1} parent=5 // pred_region
        %s213 = ssub.s32 %s21, 1
        // Predicated region
        $region13: #{tpu_custom_call.1} parent=11 // pred_check
          %p214 = pneg %p68
        $region14: #{tpu_custom_call.1} parent=11 // pred_check_branch
          %216 = sbr.rel (%p214) target = $region16
        $region15: #{tpu_custom_call.1} parent=11 // pred_region
          %s218 = ssub.s32 2048, 2048
          %219 = vsyncadd [#allocation6], %s218
          %s220 = sshll.u32 [#allocation5], 4
          %s221 = int_to_ptr.vmem [resolvable:$true] %s220
          %226 = dma.hbm_to_vmem [thread:$0]  %s1, 2048, %s221, [#allocation6], 128, 128, 8
        $region16: #{tpu_custom_call.1} parent=11 // pred_fallthru
          _
        // Predicated region
        $region17: #{tpu_custom_call.1} parent=11 // pred_check
          %p227 = pneg %p89
        $region18: #{tpu_custom_call.1} parent=11 // pred_check_branch
          %229 = sbr.rel (%p227) target = $region20
        $region19: #{tpu_custom_call.1} parent=11 // pred_region
          _
        $region20: #{tpu_custom_call.1} parent=11 // pred_fallthru
          _
        // Predicated region
        $region21: #{tpu_custom_call.1} parent=11 // pred_check
          %p230 = pneg %p110
        $region22: #{tpu_custom_call.1} parent=11 // pred_check_branch
          %232 = sbr.rel (%p230) target = $region24
        $region23: #{tpu_custom_call.1} parent=11 // pred_region
          %s234 = ssub.s32 2048, 2048
          %235 = vsyncadd [#allocation6], %s234
          %s236 = sshll.u32 [#allocation7], 4
          %s237 = int_to_ptr.vmem [resolvable:$true] %s236
          %242 = dma.hbm_to_vmem [thread:$0]  %s3, 2048, %s237, [#allocation6], 128, 128, 8
        $region24: #{tpu_custom_call.1} parent=11 // pred_fallthru
          _
        // Predicated region
        $region25: #{tpu_custom_call.1} parent=11 // pred_check
          %p243 = pneg %p131
        $region26: #{tpu_custom_call.1} parent=11 // pred_check_branch
          %245 = sbr.rel (%p243) target = $region28
        $region27: #{tpu_custom_call.1} parent=11 // pred_region
          _
        $region28: #{tpu_custom_call.1} parent=11 // pred_fallthru
          _
        // Predicated region
        $region29: #{tpu_custom_call.1} parent=11 // pred_check
          %p246 = pneg %p152
        $region30: #{tpu_custom_call.1} parent=11 // pred_check_branch
          %248 = sbr.rel (%p246) target = $region32
        $region31: #{tpu_custom_call.1} parent=11 // pred_region
          %s250 = ssub.s32 2048, 2048
          %251 = vsyncadd [#allocation9], %s250
          %s252 = sshll.u32 [#allocation8], 4
          %s253 = int_to_ptr.vmem [resolvable:$true] %s252
          %258 = dma.hbm_to_vmem [thread:$0]  %s5, 2048, %s253, [#allocation9], 128, 128, 8
        $region32: #{tpu_custom_call.1} parent=11 // pred_fallthru
          _
        // Predicated region
        $region33: #{tpu_custom_call.1} parent=11 // pred_check
          %p259 = pneg %p173
        $region34: #{tpu_custom_call.1} parent=11 // pred_check_branch
          %261 = sbr.rel (%p259) target = $region36
        $region35: #{tpu_custom_call.1} parent=11 // pred_region
          _
        $region36: #{tpu_custom_call.1} parent=11 // pred_fallthru
          _
      $region12: #{tpu_custom_call.1} parent=5 // pred_fallthru
        _
      %p262 = scmp.lt.s32.totalorder %s21, 4
      // Predicated region
      $region37: #{tpu_custom_call.1} parent=5 // pred_check
        %p263 = pneg %p262
      $region38: #{tpu_custom_call.1} parent=5 // pred_check_branch
        %265 = sbr.rel (%p263) target = $region40
      $region39: #{tpu_custom_call.1} parent=5 // pred_region
        // Predicated region
        $region41: #{tpu_custom_call.1} parent=39 // pred_check
          %p266 = pneg %p41
        $region42: #{tpu_custom_call.1} parent=39 // pred_check_branch
          %268 = sbr.rel (%p266) target = $region44
        $region43: #{tpu_custom_call.1} parent=39 // pred_region
          %s269 = sand.u32 %s31, 1
          %s270 = scalar_lea.sflag [#allocation3], %s269
          %s271 = sand.u32 %s31, 1
          %s272 = smul.addr %s271, 256
          %s273 = scalar_lea.vmem [#allocation2], %s272
          %s274 = smul.u32 32, %s21
          %s276 = ssub.s32 4096, 4096
          %277 = vsyncadd %s270, %s276
          %s278 = smul.addr %s274, 128
          %s279 = scalar_lea.hbm %s0, %s278
          %s280 = sshll.u32 %s273, 4
          %s281 = int_to_ptr.vmem [resolvable:$true] %s280
          %286 = dma.hbm_to_vmem [thread:$0]  %s279, 4096, %s281, %s270, 128, 128, 8
        $region44: #{tpu_custom_call.1} parent=39 // pred_fallthru
          _
      $region40: #{tpu_custom_call.1} parent=5 // pred_fallthru
        _
      %p287 = scmp.le.s32.totalorder 1, %s21
      %p288 = scmp.lt.s32.totalorder %s21, 5
      %p289 = pnand %p287, %p288
      %p290 = pneg %p289
      // Predicated region
      $region45: #{tpu_custom_call.1} parent=5 // pred_check
        _
      $region46: #{tpu_custom_call.1} parent=5 // pred_check_branch
        %292 = sbr.rel (%p289) target = $region48
      $region47: #{tpu_custom_call.1} parent=5 // pred_region
        %s293 = ssub.s32 %s21, 1
        %s294 = sand.u32 %s34, 1
        %s295 = scalar_lea.sflag [#allocation3], %s294
        %s296 = sand.u32 %s34, 1
        %s297 = smul.addr %s296, 256
        %s298 = scalar_lea.vmem [#allocation2], %s297
        // Predicated region
        $region49: #{tpu_custom_call.1} parent=47 // pred_check
          %p299 = pneg %p47
        $region50: #{tpu_custom_call.1} parent=47 // pred_check_branch
          %301 = sbr.rel (%p299) target = $region52
        $region51: #{tpu_custom_call.1} parent=47 // pred_region
          %302 = dma.done %s295, 4096
        $region52: #{tpu_custom_call.1} parent=47 // pred_fallthru
          _
        // Predicated region
        $region53: #{tpu_custom_call.1} parent=47 // pred_check
          %p303 = pneg %p68
        $region54: #{tpu_custom_call.1} parent=47 // pred_check_branch
          %305 = sbr.rel (%p303) target = $region56
        $region55: #{tpu_custom_call.1} parent=47 // pred_region
          %306 = dma.done [#allocation6], 2048
        $region56: #{tpu_custom_call.1} parent=47 // pred_fallthru
          _
        // Predicated region
        $region57: #{tpu_custom_call.1} parent=47 // pred_check
          %p307 = pneg %p110
        $region58: #{tpu_custom_call.1} parent=47 // pred_check_branch
          %309 = sbr.rel (%p307) target = $region60
        $region59: #{tpu_custom_call.1} parent=47 // pred_region
          %310 = dma.done [#allocation6], 2048
        $region60: #{tpu_custom_call.1} parent=47 // pred_fallthru
          _
        // Predicated region
        $region61: #{tpu_custom_call.1} parent=47 // pred_check
          %p311 = pneg %p152
        $region62: #{tpu_custom_call.1} parent=47 // pred_check_branch
          %313 = sbr.rel (%p311) target = $region64
        $region63: #{tpu_custom_call.1} parent=47 // pred_region
          %314 = dma.done [#allocation9], 2048
        $region64: #{tpu_custom_call.1} parent=47 // pred_fallthru
          _
        %s315 = sand.u32 %s34, 1
        %s316 = scalar_lea.sflag [#allocation3], %s315
        %s317 = sand.u32 %s34, 1
        %s318 = smul.addr %s317, 256
        %s319 = scalar_lea.vmem [#allocation2], %s318
        %p320 = pneg %p47
        %p321 = pneg %p44
        %p322 = pneg %p68
        %p323 = pneg %p65
        %p324 = pneg %p89
        %p325 = pneg %p86
        %p326 = pneg %p110
        %p327 = pneg %p107
        %p328 = pneg %p131
        %p329 = pneg %p128
        %p330 = pneg %p152
        %p331 = pneg %p149
        %p332 = pneg %p173
        %p333 = pneg %p170
        %p334 = pneg %p199
        %p335 = pneg %p196
        %s336 = sand.u32 %s186, 1
        %s337 = scalar_lea.sflag [#allocation4], %s336
        %s338 = sand.u32 %s186, 1
        %s339 = smul.addr %s338, 256
        %s340 = scalar_lea.vmem [#allocation10], %s339
        %s341 = smul.u32 32, %s26
        %s342 = smul.u32 32, %s26
        %v343 = vld [vmem:[%s298] sm:$0xff]
        %v344 = vld [vmem:[%s298 + $0x8] sm:$0xff]
        %v345 = vld [vmem:[%s298 + $0x10] sm:$0xff]
        %v346 = vld [vmem:[%s298 + $0x18] sm:$0xff]
        %v347 = vld [vmem:[%s298 + $0x20] sm:$0xff]
        %v348 = vld [vmem:[%s298 + $0x28] sm:$0xff]
        %v349 = vld [vmem:[%s298 + $0x30] sm:$0xff]
        %v350 = vld [vmem:[%s298 + $0x38] sm:$0xff]
        %v351 = vld [vmem:[%s298 + $0x40] sm:$0xff]
        %v352 = vld [vmem:[%s298 + $0x48] sm:$0xff]
        %v353 = vld [vmem:[%s298 + $0x50] sm:$0xff]
        %v354 = vld [vmem:[%s298 + $0x58] sm:$0xff]
        %v355 = vld [vmem:[%s298 + $0x60] sm:$0xff]
        %v356 = vld [vmem:[%s298 + $0x68] sm:$0xff]
        %v357 = vld [vmem:[%s298 + $0x70] sm:$0xff]
        %v358 = vld [vmem:[%s298 + $0x78] sm:$0xff]
        %v359 = vld [vmem:[%s298 + $0x80] sm:$0xff]
        %v360 = vld [vmem:[%s298 + $0x88] sm:$0xff]
        %v361 = vld [vmem:[%s298 + $0x90] sm:$0xff]
        %v362 = vld [vmem:[%s298 + $0x98] sm:$0xff]
        %v363 = vld [vmem:[%s298 + $0xa0] sm:$0xff]
        %v364 = vld [vmem:[%s298 + $0xa8] sm:$0xff]
        %v365 = vld [vmem:[%s298 + $0xb0] sm:$0xff]
        %v366 = vld [vmem:[%s298 + $0xb8] sm:$0xff]
        %v367 = vld [vmem:[%s298 + $0xc0] sm:$0xff]
        %v368 = vld [vmem:[%s298 + $0xc8] sm:$0xff]
        %v369 = vld [vmem:[%s298 + $0xd0] sm:$0xff]
        %v370 = vld [vmem:[%s298 + $0xd8] sm:$0xff]
        %v371 = vld [vmem:[%s298 + $0xe0] sm:$0xff]
        %v372 = vld [vmem:[%s298 + $0xe8] sm:$0xff]
        %v373 = vld [vmem:[%s298 + $0xf0] sm:$0xff]
        %v374 = vld [vmem:[%s298 + $0xf8] sm:$0xff]
        %v375 = vld [vmem:[#allocation5] sm:$0xff]
        %v376 = vld [vmem:[#allocation5 + $0x8] sm:$0xff]
        %v377 = vld [vmem:[#allocation5 + $0x10] sm:$0xff]
        %v378 = vld [vmem:[#allocation5 + $0x18] sm:$0xff]
        %v379 = vld [vmem:[#allocation5 + $0x20] sm:$0xff]
        %v380 = vld [vmem:[#allocation5 + $0x28] sm:$0xff]
        %v381 = vld [vmem:[#allocation5 + $0x30] sm:$0xff]
        %v382 = vld [vmem:[#allocation5 + $0x38] sm:$0xff]
        %v383 = vld [vmem:[#allocation5 + $0x40] sm:$0xff]
        %v384 = vld [vmem:[#allocation5 + $0x48] sm:$0xff]
        %v385 = vld [vmem:[#allocation5 + $0x50] sm:$0xff]
        %v386 = vld [vmem:[#allocation5 + $0x58] sm:$0xff]
        %v387 = vld [vmem:[#allocation5 + $0x60] sm:$0xff]
        %v388 = vld [vmem:[#allocation5 + $0x68] sm:$0xff]
        %v389 = vld [vmem:[#allocation5 + $0x70] sm:$0xff]
        %v390 = vld [vmem:[#allocation5 + $0x78] sm:$0xff]
        %v391 = vld [vmem:[%s2] sm:$0x1]
        %v393 = vlaneseq
        %v394 = vshrl.u32 %v393, 7
        %v395 = vsub.s32 0, %v394
        %v396 = vrot.slane %v391, %v395
        %398 = vmatprep.subr.mxu0 0.0
        %399 = vmatpush1.msra.mxu0 %v375
        %400 = vmatprep.subr.mxu0 0.0
        %401 = vmatpush1.msra.mxu0 %v376
        %402 = vmatprep.subr.mxu0 0.0
        %403 = vmatpush1.msra.mxu0 %v377
        %404 = vmatprep.subr.mxu0 0.0
        %405 = vmatpush1.msra.mxu0 %v378
        %406 = vmatprep.subr.mxu0 0.0
        %407 = vmatpush1.msra.mxu0 %v379
        %408 = vmatprep.subr.mxu0 0.0
        %409 = vmatpush1.msra.mxu0 %v380
        %410 = vmatprep.subr.mxu0 0.0
        %411 = vmatpush1.msra.mxu0 %v381
        %412 = vmatprep.subr.mxu0 0.0
        %413 = vmatpush1.msra.mxu0 %v382
        %414 = vmatprep.subr.mxu0 0.0
        %415 = vmatpush1.msra.mxu0 %v383
        %416 = vmatprep.subr.mxu0 0.0
        %417 = vmatpush1.msra.mxu0 %v384
        %418 = vmatprep.subr.mxu0 0.0
        %419 = vmatpush1.msra.mxu0 %v385
        %420 = vmatprep.subr.mxu0 0.0
        %421 = vmatpush1.msra.mxu0 %v386
        %422 = vmatprep.subr.mxu0 0.0
        %423 = vmatpush1.msra.mxu0 %v387
        %424 = vmatprep.subr.mxu0 0.0
        %425 = vmatpush1.msra.mxu0 %v388
        %426 = vmatprep.subr.mxu0 0.0
        %427 = vmatpush1.msra.mxu0 %v389
        %428 = vmatprep.subr.mxu0 0.0
        %429 = vmatpush1.msra.mxu0 %v390
        %430 = vmatprep.subr.mxu0 0.0
        %431 = vmatpush1.msra.mxu0 0.0
        %432 = vmatprep.subr.mxu0 0.0
        %433 = vmatpush1.msra.mxu0 0.0
        %434 = vmatprep.subr.mxu0 0.0
        %435 = vmatpush1.msra.mxu0 0.0
        %436 = vmatprep.subr.mxu0 0.0
        %437 = vmatpush1.msra.mxu0 0.0
        %438 = vmatprep.subr.mxu0 0.0
        %439 = vmatpush1.msra.mxu0 0.0
        %440 = vmatprep.subr.mxu0 0.0
        %441 = vmatpush1.msra.mxu0 0.0
        %442 = vmatprep.subr.mxu0 0.0
        %443 = vmatpush1.msra.mxu0 0.0
        %444 = vmatprep.subr.mxu0 0.0
        %445 = vmatpush1.msra.mxu0 0.0
        %446 = vmatprep.subr.mxu0 0.0
        %447 = vmatpush1.msra.mxu0 0.0
        %448 = vmatprep.subr.mxu0 0.0
        %449 = vmatpush1.msra.mxu0 0.0
        %450 = vmatprep.subr.mxu0 0.0
        %451 = vmatpush1.msra.mxu0 0.0
        %452 = vmatprep.subr.mxu0 0.0
        %453 = vmatpush1.msra.mxu0 0.0
        %454 = vmatprep.subr.mxu0 0.0
        %455 = vmatpush1.msra.mxu0 0.0
        %456 = vmatprep.subr.mxu0 0.0
        %457 = vmatpush1.msra.mxu0 0.0
        %458 = vmatprep.subr.mxu0 0.0
        %459 = vmatpush1.msra.mxu0 0.0
        %460 = vmatprep.subr.mxu0 0.0
        %461 = vmatpush1.msra.mxu0 0.0
        %462 = vmatprep.mubr.f32.mxu0 0.0
        %463 = vmatmul.mubr.f32.gmra.mrb[0].mxu0 %v343
        %v464 = vpop.f32.mrb[0].mxu0
        %v465 = vadd.f32 %v396, %v464
        %v466 = vpop.f32.mrb[0].mxu0
        %467 = vmatprep.mubr.f32.mxu0 0.0
        %468 = vmatmul.mubr.f32.gmra.mrb[0].mxu0 %v344
        %v469 = vpop.f32.mrb[0].mxu0
        %v470 = vadd.f32 %v396, %v469
        %v471 = vpop.f32.mrb[0].mxu0
        %472 = vmatprep.mubr.f32.mxu0 0.0
        %473 = vmatmul.mubr.f32.gmra.mrb[0].mxu0 %v345
        %v474 = vpop.f32.mrb[0].mxu0
        %v475 = vadd.f32 %v396, %v474
        %v476 = vpop.f32.mrb[0].mxu0
        %477 = vmatprep.mubr.f32.mxu0 0.0
        %478 = vmatmul.mubr.f32.gmra.mrb[0].mxu0 %v346
        %v479 = vpop.f32.mrb[0].mxu0
        %v480 = vadd.f32 %v396, %v479
        %v481 = vpop.f32.mrb[0].mxu0
        %482 = vmatprep.mubr.f32.mxu0 0.0
        %483 = vmatmul.mubr.f32.gmra.mrb[0].mxu0 %v347
        %v484 = vpop.f32.mrb[0].mxu0
        %v485 = vadd.f32 %v396, %v484
        %v486 = vpop.f32.mrb[0].mxu0
        %487 = vmatprep.mubr.f32.mxu0 0.0
        %488 = vmatmul.mubr.f32.gmra.mrb[0].mxu0 %v348
        %v489 = vpop.f32.mrb[0].mxu0
        %v490 = vadd.f32 %v396, %v489
        %v491 = vpop.f32.mrb[0].mxu0
        %492 = vmatprep.mubr.f32.mxu0 0.0
        %493 = vmatmul.mubr.f32.gmra.mrb[0].mxu0 %v349
        %v494 = vpop.f32.mrb[0].mxu0
        %v495 = vadd.f32 %v396, %v494
        %v496 = vpop.f32.mrb[0].mxu0
        %497 = vmatprep.mubr.f32.mxu0 0.0
        %498 = vmatmul.mubr.f32.gmra.mrb[0].mxu0 %v350
        %v499 = vpop.f32.mrb[0].mxu0
        %v500 = vadd.f32 %v396, %v499
        %v501 = vpop.f32.mrb[0].mxu0
        %502 = vmatprep.mubr.f32.mxu0 0.0
        %503 = vmatmul.mubr.f32.gmra.mrb[0].mxu0 %v351
        %v504 = vpop.f32.mrb[0].mxu0
        %v505 = vadd.f32 %v396, %v504
        %v506 = vpop.f32.mrb[0].mxu0
        %507 = vmatprep.mubr.f32.mxu0 0.0
        %508 = vmatmul.mubr.f32.gmra.mrb[0].mxu0 %v352
        %v509 = vpop.f32.mrb[0].mxu0
        %v510 = vadd.f32 %v396, %v509
        %v511 = vpop.f32.mrb[0].mxu0
        %512 = vmatprep.mubr.f32.mxu0 0.0
        %513 = vmatmul.mubr.f32.gmra.mrb[0].mxu0 %v353
        %v514 = vpop.f32.mrb[0].mxu0
        %v515 = vadd.f32 %v396, %v514
        %v516 = vpop.f32.mrb[0].mxu0
        %517 = vmatprep.mubr.f32.mxu0 0.0
        %518 = vmatmul.mubr.f32.gmra.mrb[0].mxu0 %v354
        %v519 = vpop.f32.mrb[0].mxu0
        %v520 = vadd.f32 %v396, %v519
        %v521 = vpop.f32.mrb[0].mxu0
        %522 = vmatprep.mubr.f32.mxu0 0.0
        %523 = vmatmul.mubr.f32.gmra.mrb[0].mxu0 %v355
        %v524 = vpop.f32.mrb[0].mxu0
        %v525 = vadd.f32 %v396, %v524
        %v526 = vpop.f32.mrb[0].mxu0
        %527 = vmatprep.mubr.f32.mxu0 0.0
        %528 = vmatmul.mubr.f32.gmra.mrb[0].mxu0 %v356
        %v529 = vpop.f32.mrb[0].mxu0
        %v530 = vadd.f32 %v396, %v529
        %v531 = vpop.f32.mrb[0].mxu0
        %532 = vmatprep.mubr.f32.mxu0 0.0
        %533 = vmatmul.mubr.f32.gmra.mrb[0].mxu0 %v357
        %v534 = vpop.f32.mrb[0].mxu0
        %v535 = vadd.f32 %v396, %v534
        %v536 = vpop.f32.mrb[0].mxu0
        %537 = vmatprep.mubr.f32.mxu0 0.0
        %538 = vmatmul.mubr.f32.gmra.mrb[0].mxu0 %v358
        %v539 = vpop.f32.mrb[0].mxu0
        %v540 = vadd.f32 %v396, %v539
        %v541 = vpop.f32.mrb[0].mxu0
        %542 = vmatprep.mubr.f32.mxu0 0.0
        %543 = vmatmul.mubr.f32.gmra.mrb[0].mxu0 %v359
        %v544 = vpop.f32.mrb[0].mxu0
        %v545 = vadd.f32 %v396, %v544
        %v546 = vpop.f32.mrb[0].mxu0
        %547 = vmatprep.mubr.f32.mxu0 0.0
        %548 = vmatmul.mubr.f32.gmra.mrb[0].mxu0 %v360
        %v549 = vpop.f32.mrb[0].mxu0
        %v550 = vadd.f32 %v396, %v549
        %v551 = vpop.f32.mrb[0].mxu0
        %552 = vmatprep.mubr.f32.mxu0 0.0
        %553 = vmatmul.mubr.f32.gmra.mrb[0].mxu0 %v361
        %v554 = vpop.f32.mrb[0].mxu0
        %v555 = vadd.f32 %v396, %v554
        %v556 = vpop.f32.mrb[0].mxu0
        %557 = vmatprep.mubr.f32.mxu0 0.0
        %558 = vmatmul.mubr.f32.gmra.mrb[0].mxu0 %v362
        %v559 = vpop.f32.mrb[0].mxu0
        %v560 = vadd.f32 %v396, %v559
        %v561 = vpop.f32.mrb[0].mxu0
        %562 = vmatprep.mubr.f32.mxu0 0.0
        %563 = vmatmul.mubr.f32.gmra.mrb[0].mxu0 %v363
        %v564 = vpop.f32.mrb[0].mxu0
        %v565 = vadd.f32 %v396, %v564
        %v566 = vpop.f32.mrb[0].mxu0
        %567 = vmatprep.mubr.f32.mxu0 0.0
        %568 = vmatmul.mubr.f32.gmra.mrb[0].mxu0 %v364
        %v569 = vpop.f32.mrb[0].mxu0
        %v570 = vadd.f32 %v396, %v569
        %v571 = vpop.f32.mrb[0].mxu0
        %572 = vmatprep.mubr.f32.mxu0 0.0
        %573 = vmatmul.mubr.f32.gmra.mrb[0].mxu0 %v365
        %v574 = vpop.f32.mrb[0].mxu0
        %v575 = vadd.f32 %v396, %v574
        %v576 = vpop.f32.mrb[0].mxu0
        %577 = vmatprep.mubr.f32.mxu0 0.0
        %578 = vmatmul.mubr.f32.gmra.mrb[0].mxu0 %v366
        %v579 = vpop.f32.mrb[0].mxu0
        %v580 = vadd.f32 %v396, %v579
        %v581 = vpop.f32.mrb[0].mxu0
        %582 = vmatprep.mubr.f32.mxu0 0.0
        %583 = vmatmul.mubr.f32.gmra.mrb[0].mxu0 %v367
        %v584 = vpop.f32.mrb[0].mxu0
        %v585 = vadd.f32 %v396, %v584
        %v586 = vpop.f32.mrb[0].mxu0
        %587 = vmatprep.mubr.f32.mxu0 0.0
        %588 = vmatmul.mubr.f32.gmra.mrb[0].mxu0 %v368
        %v589 = vpop.f32.mrb[0].mxu0
        %v590 = vadd.f32 %v396, %v589
        %v591 = vpop.f32.mrb[0].mxu0
        %592 = vmatprep.mubr.f32.mxu0 0.0
        %593 = vmatmul.mubr.f32.gmra.mrb[0].mxu0 %v369
        %v594 = vpop.f32.mrb[0].mxu0
        %v595 = vadd.f32 %v396, %v594
        %v596 = vpop.f32.mrb[0].mxu0
        %597 = vmatprep.mubr.f32.mxu0 0.0
        %598 = vmatmul.mubr.f32.gmra.mrb[0].mxu0 %v370
        %v599 = vpop.f32.mrb[0].mxu0
        %v600 = vadd.f32 %v396, %v599
        %v601 = vpop.f32.mrb[0].mxu0
        %602 = vmatprep.mubr.f32.mxu0 0.0
        %603 = vmatmul.mubr.f32.gmra.mrb[0].mxu0 %v371
        %v604 = vpop.f32.mrb[0].mxu0
        %v605 = vadd.f32 %v396, %v604
        %v606 = vpop.f32.mrb[0].mxu0
        %607 = vmatprep.mubr.f32.mxu0 0.0
        %608 = vmatmul.mubr.f32.gmra.mrb[0].mxu0 %v372
        %v609 = vpop.f32.mrb[0].mxu0
        %v610 = vadd.f32 %v396, %v609
        %v611 = vpop.f32.mrb[0].mxu0
        %612 = vmatprep.mubr.f32.mxu0 0.0
        %613 = vmatmul.mubr.f32.gmra.mrb[0].mxu0 %v373
        %v614 = vpop.f32.mrb[0].mxu0
        %v615 = vadd.f32 %v396, %v614
        %v616 = vpop.f32.mrb[0].mxu0
        %617 = vmatprep.mubr.f32.mxu0 0.0
        %618 = vmatmul.mubr.f32.gmra.mrb[0].mxu0 %v374
        %v619 = vpop.f32.mrb[0].mxu0
        %v620 = vadd.f32 %v396, %v619
        %v621 = vpop.f32.mrb[0].mxu0
        %622 = vdwg.mxu0
        %v623 = vmax.f32 %v465, 0.0
        %v624 = vmax.f32 %v470, 0.0
        %v625 = vmax.f32 %v475, 0.0
        %v626 = vmax.f32 %v480, 0.0
        %v627 = vmax.f32 %v485, 0.0
        %v628 = vmax.f32 %v490, 0.0
        %v629 = vmax.f32 %v495, 0.0
        %v630 = vmax.f32 %v500, 0.0
        %v631 = vmax.f32 %v505, 0.0
        %v632 = vmax.f32 %v510, 0.0
        %v633 = vmax.f32 %v515, 0.0
        %v634 = vmax.f32 %v520, 0.0
        %v635 = vmax.f32 %v525, 0.0
        %v636 = vmax.f32 %v530, 0.0
        %v637 = vmax.f32 %v535, 0.0
        %v638 = vmax.f32 %v540, 0.0
        %v639 = vmax.f32 %v545, 0.0
        %v640 = vmax.f32 %v550, 0.0
        %v641 = vmax.f32 %v555, 0.0
        %v642 = vmax.f32 %v560, 0.0
        %v643 = vmax.f32 %v565, 0.0
        %v644 = vmax.f32 %v570, 0.0
        %v645 = vmax.f32 %v575, 0.0
        %v646 = vmax.f32 %v580, 0.0
        %v647 = vmax.f32 %v585, 0.0
        %v648 = vmax.f32 %v590, 0.0
        %v649 = vmax.f32 %v595, 0.0
        %v650 = vmax.f32 %v600, 0.0
        %v651 = vmax.f32 %v605, 0.0
        %v652 = vmax.f32 %v610, 0.0
        %v653 = vmax.f32 %v615, 0.0
        %v654 = vmax.f32 %v620, 0.0
        %v655 = vld [vmem:[#allocation7] sm:$0xff]
        %v656 = vld [vmem:[#allocation7 + $0x8] sm:$0xff]
        %v657 = vld [vmem:[#allocation7 + $0x10] sm:$0xff]
        %v658 = vld [vmem:[#allocation7 + $0x18] sm:$0xff]
        %v659 = vld [vmem:[#allocation7 + $0x20] sm:$0xff]
        %v660 = vld [vmem:[#allocation7 + $0x28] sm:$0xff]
        %v661 = vld [vmem:[#allocation7 + $0x30] sm:$0xff]
        %v662 = vld [vmem:[#allocation7 + $0x38] sm:$0xff]
        %v663 = vld [vmem:[#allocation7 + $0x40] sm:$0xff]
        %v664 = vld [vmem:[#allocation7 + $0x48] sm:$0xff]
        %v665 = vld [vmem:[#allocation7 + $0x50] sm:$0xff]
        %v666 = vld [vmem:[#allocation7 + $0x58] sm:$0xff]
        %v667 = vld [vmem:[#allocation7 + $0x60] sm:$0xff]
        %v668 = vld [vmem:[#allocation7 + $0x68] sm:$0xff]
        %v669 = vld [vmem:[#allocation7 + $0x70] sm:$0xff]
        %v670 = vld [vmem:[#allocation7 + $0x78] sm:$0xff]
        %v671 = vld [vmem:[%s4] sm:$0x1]
        %v673 = vlaneseq
        %v674 = vshrl.u32 %v673, 7
        %v675 = vsub.s32 0, %v674
        %v676 = vrot.slane %v671, %v675
        %678 = vmatprep.subr.mxu0 0.0
        %679 = vmatpush1.msra.mxu0 %v655
        %680 = vmatprep.subr.mxu0 0.0
        %681 = vmatpush1.msra.mxu0 %v656
        %682 = vmatprep.subr.mxu0 0.0
        %683 = vmatpush1.msra.mxu0 %v657
        %684 = vmatprep.subr.mxu0 0.0
        %685 = vmatpush1.msra.mxu0 %v658
        %686 = vmatprep.subr.mxu0 0.0
        %687 = vmatpush1.msra.mxu0 %v659
        %688 = vmatprep.subr.mxu0 0.0
        %689 = vmatpush1.msra.mxu0 %v660
        %690 = vmatprep.subr.mxu0 0.0
        %691 = vmatpush1.msra.mxu0 %v661
        %692 = vmatprep.subr.mxu0 0.0
        %693 = vmatpush1.msra.mxu0 %v662
        %694 = vmatprep.subr.mxu0 0.0
        %695 = vmatpush1.msra.mxu0 %v663
        %696 = vmatprep.subr.mxu0 0.0
        %697 = vmatpush1.msra.mxu0 %v664
        %698 = vmatprep.subr.mxu0 0.0
        %699 = vmatpush1.msra.mxu0 %v665
        %700 = vmatprep.subr.mxu0 0.0
        %701 = vmatpush1.msra.mxu0 %v666
        %702 = vmatprep.subr.mxu0 0.0
        %703 = vmatpush1.msra.mxu0 %v667
        %704 = vmatprep.subr.mxu0 0.0
        %705 = vmatpush1.msra.mxu0 %v668
        %706 = vmatprep.subr.mxu0 0.0
        %707 = vmatpush1.msra.mxu0 %v669
        %708 = vmatprep.subr.mxu0 0.0
        %709 = vmatpush1.msra.mxu0 %v670
        %710 = vmatprep.subr.mxu0 0.0
        %711 = vmatpush1.msra.mxu0 0.0
        %712 = vmatprep.subr.mxu0 0.0
        %713 = vmatpush1.msra.mxu0 0.0
        %714 = vmatprep.subr.mxu0 0.0
        %715 = vmatpush1.msra.mxu0 0.0
        %716 = vmatprep.subr.mxu0 0.0
        %717 = vmatpush1.msra.mxu0 0.0
        %718 = vmatprep.subr.mxu0 0.0
        %719 = vmatpush1.msra.mxu0 0.0
        %720 = vmatprep.subr.mxu0 0.0
        %721 = vmatpush1.msra.mxu0 0.0
        %722 = vmatprep.subr.mxu0 0.0
        %723 = vmatpush1.msra.mxu0 0.0
        %724 = vmatprep.subr.mxu0 0.0
        %725 = vmatpush1.msra.mxu0 0.0
        %726 = vmatprep.subr.mxu0 0.0
        %727 = vmatpush1.msra.mxu0 0.0
        %728 = vmatprep.subr.mxu0 0.0
        %729 = vmatpush1.msra.mxu0 0.0
        %730 = vmatprep.subr.mxu0 0.0
        %731 = vmatpush1.msra.mxu0 0.0
        %732 = vmatprep.subr.mxu0 0.0
        %733 = vmatpush1.msra.mxu0 0.0
        %734 = vmatprep.subr.mxu0 0.0
        %735 = vmatpush1.msra.mxu0 0.0
        %736 = vmatprep.subr.mxu0 0.0
        %737 = vmatpush1.msra.mxu0 0.0
        %738 = vmatprep.subr.mxu0 0.0
        %739 = vmatpush1.msra.mxu0 0.0
        %740 = vmatprep.subr.mxu0 0.0
        %741 = vmatpush1.msra.mxu0 0.0
        %742 = vmatprep.mubr.f32.mxu0 0.0
        %743 = vmatmul.mubr.f32.gmra.mrb[0].mxu0 %v623
        %v744 = vpop.f32.mrb[0].mxu0
        %v745 = vadd.f32 %v676, %v744
        %v746 = vpop.f32.mrb[0].mxu0
        %747 = vmatprep.mubr.f32.mxu0 0.0
        %748 = vmatmul.mubr.f32.gmra.mrb[0].mxu0 %v624
        %v749 = vpop.f32.mrb[0].mxu0
        %v750 = vadd.f32 %v676, %v749
        %v751 = vpop.f32.mrb[0].mxu0
        %752 = vmatprep.mubr.f32.mxu0 0.0
        %753 = vmatmul.mubr.f32.gmra.mrb[0].mxu0 %v625
        %v754 = vpop.f32.mrb[0].mxu0
        %v755 = vadd.f32 %v676, %v754
        %v756 = vpop.f32.mrb[0].mxu0
        %757 = vmatprep.mubr.f32.mxu0 0.0
        %758 = vmatmul.mubr.f32.gmra.mrb[0].mxu0 %v626
        %v759 = vpop.f32.mrb[0].mxu0
        %v760 = vadd.f32 %v676, %v759
        %v761 = vpop.f32.mrb[0].mxu0
        %762 = vmatprep.mubr.f32.mxu0 0.0
        %763 = vmatmul.mubr.f32.gmra.mrb[0].mxu0 %v627
        %v764 = vpop.f32.mrb[0].mxu0
        %v765 = vadd.f32 %v676, %v764
        %v766 = vpop.f32.mrb[0].mxu0
        %767 = vmatprep.mubr.f32.mxu0 0.0
        %768 = vmatmul.mubr.f32.gmra.mrb[0].mxu0 %v628
        %v769 = vpop.f32.mrb[0].mxu0
        %v770 = vadd.f32 %v676, %v769
        %v771 = vpop.f32.mrb[0].mxu0
        %772 = vmatprep.mubr.f32.mxu0 0.0
        %773 = vmatmul.mubr.f32.gmra.mrb[0].mxu0 %v629
        %v774 = vpop.f32.mrb[0].mxu0
        %v775 = vadd.f32 %v676, %v774
        %v776 = vpop.f32.mrb[0].mxu0
        %777 = vmatprep.mubr.f32.mxu0 0.0
        %778 = vmatmul.mubr.f32.gmra.mrb[0].mxu0 %v630
        %v779 = vpop.f32.mrb[0].mxu0
        %v780 = vadd.f32 %v676, %v779
        %v781 = vpop.f32.mrb[0].mxu0
        %782 = vmatprep.mubr.f32.mxu0 0.0
        %783 = vmatmul.mubr.f32.gmra.mrb[0].mxu0 %v631
        %v784 = vpop.f32.mrb[0].mxu0
        %v785 = vadd.f32 %v676, %v784
        %v786 = vpop.f32.mrb[0].mxu0
        %787 = vmatprep.mubr.f32.mxu0 0.0
        %788 = vmatmul.mubr.f32.gmra.mrb[0].mxu0 %v632
        %v789 = vpop.f32.mrb[0].mxu0
        %v790 = vadd.f32 %v676, %v789
        %v791 = vpop.f32.mrb[0].mxu0
        %792 = vmatprep.mubr.f32.mxu0 0.0
        %793 = vmatmul.mubr.f32.gmra.mrb[0].mxu0 %v633
        %v794 = vpop.f32.mrb[0].mxu0
        %v795 = vadd.f32 %v676, %v794
        %v796 = vpop.f32.mrb[0].mxu0
        %797 = vmatprep.mubr.f32.mxu0 0.0
        %798 = vmatmul.mubr.f32.gmra.mrb[0].mxu0 %v634
        %v799 = vpop.f32.mrb[0].mxu0
        %v800 = vadd.f32 %v676, %v799
        %v801 = vpop.f32.mrb[0].mxu0
        %802 = vmatprep.mubr.f32.mxu0 0.0
        %803 = vmatmul.mubr.f32.gmra.mrb[0].mxu0 %v635
        %v804 = vpop.f32.mrb[0].mxu0
        %v805 = vadd.f32 %v676, %v804
        %v806 = vpop.f32.mrb[0].mxu0
        %807 = vmatprep.mubr.f32.mxu0 0.0
        %808 = vmatmul.mubr.f32.gmra.mrb[0].mxu0 %v636
        %v809 = vpop.f32.mrb[0].mxu0
        %v810 = vadd.f32 %v676, %v809
        %v811 = vpop.f32.mrb[0].mxu0
        %812 = vmatprep.mubr.f32.mxu0 0.0
        %813 = vmatmul.mubr.f32.gmra.mrb[0].mxu0 %v637
        %v814 = vpop.f32.mrb[0].mxu0
        %v815 = vadd.f32 %v676, %v814
        %v816 = vpop.f32.mrb[0].mxu0
        %817 = vmatprep.mubr.f32.mxu0 0.0
        %818 = vmatmul.mubr.f32.gmra.mrb[0].mxu0 %v638
        %v819 = vpop.f32.mrb[0].mxu0
        %v820 = vadd.f32 %v676, %v819
        %v821 = vpop.f32.mrb[0].mxu0
        %822 = vmatprep.mubr.f32.mxu0 0.0
        %823 = vmatmul.mubr.f32.gmra.mrb[0].mxu0 %v639
        %v824 = vpop.f32.mrb[0].mxu0
        %v825 = vadd.f32 %v676, %v824
        %v826 = vpop.f32.mrb[0].mxu0
        %827 = vmatprep.mubr.f32.mxu0 0.0
        %828 = vmatmul.mubr.f32.gmra.mrb[0].mxu0 %v640
        %v829 = vpop.f32.mrb[0].mxu0
        %v830 = vadd.f32 %v676, %v829
        %v831 = vpop.f32.mrb[0].mxu0
        %832 = vmatprep.mubr.f32.mxu0 0.0
        %833 = vmatmul.mubr.f32.gmra.mrb[0].mxu0 %v641
        %v834 = vpop.f32.mrb[0].mxu0
        %v835 = vadd.f32 %v676, %v834
        %v836 = vpop.f32.mrb[0].mxu0
        %837 = vmatprep.mubr.f32.mxu0 0.0
        %838 = vmatmul.mubr.f32.gmra.mrb[0].mxu0 %v642
        %v839 = vpop.f32.mrb[0].mxu0
        %v840 = vadd.f32 %v676, %v839
        %v841 = vpop.f32.mrb[0].mxu0
        %842 = vmatprep.mubr.f32.mxu0 0.0
        %843 = vmatmul.mubr.f32.gmra.mrb[0].mxu0 %v643
        %v844 = vpop.f32.mrb[0].mxu0
        %v845 = vadd.f32 %v676, %v844
        %v846 = vpop.f32.mrb[0].mxu0
        %847 = vmatprep.mubr.f32.mxu0 0.0
        %848 = vmatmul.mubr.f32.gmra.mrb[0].mxu0 %v644
        %v849 = vpop.f32.mrb[0].mxu0
        %v850 = vadd.f32 %v676, %v849
        %v851 = vpop.f32.mrb[0].mxu0
        %852 = vmatprep.mubr.f32.mxu0 0.0
        %853 = vmatmul.mubr.f32.gmra.mrb[0].mxu0 %v645
        %v854 = vpop.f32.mrb[0].mxu0
        %v855 = vadd.f32 %v676, %v854
        %v856 = vpop.f32.mrb[0].mxu0
        %857 = vmatprep.mubr.f32.mxu0 0.0
        %858 = vmatmul.mubr.f32.gmra.mrb[0].mxu0 %v646
        %v859 = vpop.f32.mrb[0].mxu0
        %v860 = vadd.f32 %v676, %v859
        %v861 = vpop.f32.mrb[0].mxu0
        %862 = vmatprep.mubr.f32.mxu0 0.0
        %863 = vmatmul.mubr.f32.gmra.mrb[0].mxu0 %v647
        %v864 = vpop.f32.mrb[0].mxu0
        %v865 = vadd.f32 %v676, %v864
        %v866 = vpop.f32.mrb[0].mxu0
        %867 = vmatprep.mubr.f32.mxu0 0.0
        %868 = vmatmul.mubr.f32.gmra.mrb[0].mxu0 %v648
        %v869 = vpop.f32.mrb[0].mxu0
        %v870 = vadd.f32 %v676, %v869
        %v871 = vpop.f32.mrb[0].mxu0
        %872 = vmatprep.mubr.f32.mxu0 0.0
        %873 = vmatmul.mubr.f32.gmra.mrb[0].mxu0 %v649
        %v874 = vpop.f32.mrb[0].mxu0
        %v875 = vadd.f32 %v676, %v874
        %v876 = vpop.f32.mrb[0].mxu0
        %877 = vmatprep.mubr.f32.mxu0 0.0
        %878 = vmatmul.mubr.f32.gmra.mrb[0].mxu0 %v650
        %v879 = vpop.f32.mrb[0].mxu0
        %v880 = vadd.f32 %v676, %v879
        %v881 = vpop.f32.mrb[0].mxu0
        %882 = vmatprep.mubr.f32.mxu0 0.0
        %883 = vmatmul.mubr.f32.gmra.mrb[0].mxu0 %v651
        %v884 = vpop.f32.mrb[0].mxu0
        %v885 = vadd.f32 %v676, %v884
        %v886 = vpop.f32.mrb[0].mxu0
        %887 = vmatprep.mubr.f32.mxu0 0.0
        %888 = vmatmul.mubr.f32.gmra.mrb[0].mxu0 %v652
        %v889 = vpop.f32.mrb[0].mxu0
        %v890 = vadd.f32 %v676, %v889
        %v891 = vpop.f32.mrb[0].mxu0
        %892 = vmatprep.mubr.f32.mxu0 0.0
        %893 = vmatmul.mubr.f32.gmra.mrb[0].mxu0 %v653
        %v894 = vpop.f32.mrb[0].mxu0
        %v895 = vadd.f32 %v676, %v894
        %v896 = vpop.f32.mrb[0].mxu0
        %897 = vmatprep.mubr.f32.mxu0 0.0
        %898 = vmatmul.mubr.f32.gmra.mrb[0].mxu0 %v654
        %v899 = vpop.f32.mrb[0].mxu0
        %v900 = vadd.f32 %v676, %v899
        %v901 = vpop.f32.mrb[0].mxu0
        %902 = vdwg.mxu0
        %v903 = vmax.f32 %v745, 0.0
        %v904 = vmax.f32 %v750, 0.0
        %v905 = vmax.f32 %v755, 0.0
        %v906 = vmax.f32 %v760, 0.0
        %v907 = vmax.f32 %v765, 0.0
        %v908 = vmax.f32 %v770, 0.0
        %v909 = vmax.f32 %v775, 0.0
        %v910 = vmax.f32 %v780, 0.0
        %v911 = vmax.f32 %v785, 0.0
        %v912 = vmax.f32 %v790, 0.0
        %v913 = vmax.f32 %v795, 0.0
        %v914 = vmax.f32 %v800, 0.0
        %v915 = vmax.f32 %v805, 0.0
        %v916 = vmax.f32 %v810, 0.0
        %v917 = vmax.f32 %v815, 0.0
        %v918 = vmax.f32 %v820, 0.0
        %v919 = vmax.f32 %v825, 0.0
        %v920 = vmax.f32 %v830, 0.0
        %v921 = vmax.f32 %v835, 0.0
        %v922 = vmax.f32 %v840, 0.0
        %v923 = vmax.f32 %v845, 0.0
        %v924 = vmax.f32 %v850, 0.0
        %v925 = vmax.f32 %v855, 0.0
        %v926 = vmax.f32 %v860, 0.0
        %v927 = vmax.f32 %v865, 0.0
        %v928 = vmax.f32 %v870, 0.0
        %v929 = vmax.f32 %v875, 0.0
        %v930 = vmax.f32 %v880, 0.0
        %v931 = vmax.f32 %v885, 0.0
        %v932 = vmax.f32 %v890, 0.0
        %v933 = vmax.f32 %v895, 0.0
        %v934 = vmax.f32 %v900, 0.0
        %v935 = vld [vmem:[#allocation8] sm:$0xff]
        %v936 = vld [vmem:[#allocation8 + $0x8] sm:$0xff]
        %v937 = vld [vmem:[#allocation8 + $0x10] sm:$0xff]
        %v938 = vld [vmem:[#allocation8 + $0x18] sm:$0xff]
        %v939 = vld [vmem:[#allocation8 + $0x20] sm:$0xff]
        %v940 = vld [vmem:[#allocation8 + $0x28] sm:$0xff]
        %v941 = vld [vmem:[#allocation8 + $0x30] sm:$0xff]
        %v942 = vld [vmem:[#allocation8 + $0x38] sm:$0xff]
        %v943 = vld [vmem:[#allocation8 + $0x40] sm:$0xff]
        %v944 = vld [vmem:[#allocation8 + $0x48] sm:$0xff]
        %v945 = vld [vmem:[#allocation8 + $0x50] sm:$0xff]
        %v946 = vld [vmem:[#allocation8 + $0x58] sm:$0xff]
        %v947 = vld [vmem:[#allocation8 + $0x60] sm:$0xff]
        %v948 = vld [vmem:[#allocation8 + $0x68] sm:$0xff]
        %v949 = vld [vmem:[#allocation8 + $0x70] sm:$0xff]
        %v950 = vld [vmem:[#allocation8 + $0x78] sm:$0xff]
        %v951 = vld [vmem:[%s6] sm:$0x1]
        %v953 = vlaneseq
        %v954 = vshrl.u32 %v953, 7
        %v955 = vsub.s32 0, %v954
        %v956 = vrot.slane %v951, %v955
        %958 = vmatprep.subr.mxu0 0.0
        %959 = vmatpush1.msra.mxu0 %v935
        %960 = vmatprep.subr.mxu0 0.0
        %961 = vmatpush1.msra.mxu0 %v936
        %962 = vmatprep.subr.mxu0 0.0
        %963 = vmatpush1.msra.mxu0 %v937
        %964 = vmatprep.subr.mxu0 0.0
        %965 = vmatpush1.msra.mxu0 %v938
        %966 = vmatprep.subr.mxu0 0.0
        %967 = vmatpush1.msra.mxu0 %v939
        %968 = vmatprep.subr.mxu0 0.0
        %969 = vmatpush1.msra.mxu0 %v940
        %970 = vmatprep.subr.mxu0 0.0
        %971 = vmatpush1.msra.mxu0 %v941
        %972 = vmatprep.subr.mxu0 0.0
        %973 = vmatpush1.msra.mxu0 %v942
        %974 = vmatprep.subr.mxu0 0.0
        %975 = vmatpush1.msra.mxu0 %v943
        %976 = vmatprep.subr.mxu0 0.0
        %977 = vmatpush1.msra.mxu0 %v944
        %978 = vmatprep.subr.mxu0 0.0
        %979 = vmatpush1.msra.mxu0 %v945
        %980 = vmatprep.subr.mxu0 0.0
        %981 = vmatpush1.msra.mxu0 %v946
        %982 = vmatprep.subr.mxu0 0.0
        %983 = vmatpush1.msra.mxu0 %v947
        %984 = vmatprep.subr.mxu0 0.0
        %985 = vmatpush1.msra.mxu0 %v948
        %986 = vmatprep.subr.mxu0 0.0
        %987 = vmatpush1.msra.mxu0 %v949
        %988 = vmatprep.subr.mxu0 0.0
        %989 = vmatpush1.msra.mxu0 %v950
        %990 = vmatprep.subr.mxu0 0.0
        %991 = vmatpush1.msra.mxu0 0.0
        %992 = vmatprep.subr.mxu0 0.0
        %993 = vmatpush1.msra.mxu0 0.0
        %994 = vmatprep.subr.mxu0 0.0
        %995 = vmatpush1.msra.mxu0 0.0
        %996 = vmatprep.subr.mxu0 0.0
        %997 = vmatpush1.msra.mxu0 0.0
        %998 = vmatprep.subr.mxu0 0.0
        %999 = vmatpush1.msra.mxu0 0.0
        %1000 = vmatprep.subr.mxu0 0.0
        %1001 = vmatpush1.msra.mxu0 0.0
        %1002 = vmatprep.subr.mxu0 0.0
        %1003 = vmatpush1.msra.mxu0 0.0
        %1004 = vmatprep.subr.mxu0 0.0
        %1005 = vmatpush1.msra.mxu0 0.0
        %1006 = vmatprep.subr.mxu0 0.0
        %1007 = vmatpush1.msra.mxu0 0.0
        %1008 = vmatprep.subr.mxu0 0.0
        %1009 = vmatpush1.msra.mxu0 0.0
        %1010 = vmatprep.subr.mxu0 0.0
        %1011 = vmatpush1.msra.mxu0 0.0
        %1012 = vmatprep.subr.mxu0 0.0
        %1013 = vmatpush1.msra.mxu0 0.0
        %1014 = vmatprep.subr.mxu0 0.0
        %1015 = vmatpush1.msra.mxu0 0.0
        %1016 = vmatprep.subr.mxu0 0.0
        %1017 = vmatpush1.msra.mxu0 0.0
        %1018 = vmatprep.subr.mxu0 0.0
        %1019 = vmatpush1.msra.mxu0 0.0
        %1020 = vmatprep.subr.mxu0 0.0
        %1021 = vmatpush1.msra.mxu0 0.0
        %1022 = vmatprep.mubr.f32.mxu0 0.0
        %1023 = vmatmul.mubr.f32.gmra.mrb[0].mxu0 %v903
        %v1024 = vpop.f32.mrb[0].mxu0
        %v1025 = vadd.f32 %v956, %v1024
        %v1026 = vpop.f32.mrb[0].mxu0
        %1027 = vmatprep.mubr.f32.mxu0 0.0
        %1028 = vmatmul.mubr.f32.gmra.mrb[0].mxu0 %v904
        %v1029 = vpop.f32.mrb[0].mxu0
        %v1030 = vadd.f32 %v956, %v1029
        %v1031 = vpop.f32.mrb[0].mxu0
        %1032 = vmatprep.mubr.f32.mxu0 0.0
        %1033 = vmatmul.mubr.f32.gmra.mrb[0].mxu0 %v905
        %v1034 = vpop.f32.mrb[0].mxu0
        %v1035 = vadd.f32 %v956, %v1034
        %v1036 = vpop.f32.mrb[0].mxu0
        %1037 = vmatprep.mubr.f32.mxu0 0.0
        %1038 = vmatmul.mubr.f32.gmra.mrb[0].mxu0 %v906
        %v1039 = vpop.f32.mrb[0].mxu0
        %v1040 = vadd.f32 %v956, %v1039
        %v1041 = vpop.f32.mrb[0].mxu0
        %1042 = vmatprep.mubr.f32.mxu0 0.0
        %1043 = vmatmul.mubr.f32.gmra.mrb[0].mxu0 %v907
        %v1044 = vpop.f32.mrb[0].mxu0
        %v1045 = vadd.f32 %v956, %v1044
        %v1046 = vpop.f32.mrb[0].mxu0
        %1047 = vmatprep.mubr.f32.mxu0 0.0
        %1048 = vmatmul.mubr.f32.gmra.mrb[0].mxu0 %v908
        %v1049 = vpop.f32.mrb[0].mxu0
        %v1050 = vadd.f32 %v956, %v1049
        %v1051 = vpop.f32.mrb[0].mxu0
        %1052 = vmatprep.mubr.f32.mxu0 0.0
        %1053 = vmatmul.mubr.f32.gmra.mrb[0].mxu0 %v909
        %v1054 = vpop.f32.mrb[0].mxu0
        %v1055 = vadd.f32 %v956, %v1054
        %v1056 = vpop.f32.mrb[0].mxu0
        %1057 = vmatprep.mubr.f32.mxu0 0.0
        %1058 = vmatmul.mubr.f32.gmra.mrb[0].mxu0 %v910
        %v1059 = vpop.f32.mrb[0].mxu0
        %v1060 = vadd.f32 %v956, %v1059
        %v1061 = vpop.f32.mrb[0].mxu0
        %1062 = vmatprep.mubr.f32.mxu0 0.0
        %1063 = vmatmul.mubr.f32.gmra.mrb[0].mxu0 %v911
        %v1064 = vpop.f32.mrb[0].mxu0
        %v1065 = vadd.f32 %v956, %v1064
        %v1066 = vpop.f32.mrb[0].mxu0
        %1067 = vmatprep.mubr.f32.mxu0 0.0
        %1068 = vmatmul.mubr.f32.gmra.mrb[0].mxu0 %v912
        %v1069 = vpop.f32.mrb[0].mxu0
        %v1070 = vadd.f32 %v956, %v1069
        %v1071 = vpop.f32.mrb[0].mxu0
        %1072 = vmatprep.mubr.f32.mxu0 0.0
        %1073 = vmatmul.mubr.f32.gmra.mrb[0].mxu0 %v913
        %v1074 = vpop.f32.mrb[0].mxu0
        %v1075 = vadd.f32 %v956, %v1074
        %v1076 = vpop.f32.mrb[0].mxu0
        %1077 = vmatprep.mubr.f32.mxu0 0.0
        %1078 = vmatmul.mubr.f32.gmra.mrb[0].mxu0 %v914
        %v1079 = vpop.f32.mrb[0].mxu0
        %v1080 = vadd.f32 %v956, %v1079
        %v1081 = vpop.f32.mrb[0].mxu0
        %1082 = vmatprep.mubr.f32.mxu0 0.0
        %1083 = vmatmul.mubr.f32.gmra.mrb[0].mxu0 %v915
        %v1084 = vpop.f32.mrb[0].mxu0
        %v1085 = vadd.f32 %v956, %v1084
        %v1086 = vpop.f32.mrb[0].mxu0
        %1087 = vmatprep.mubr.f32.mxu0 0.0
        %1088 = vmatmul.mubr.f32.gmra.mrb[0].mxu0 %v916
        %v1089 = vpop.f32.mrb[0].mxu0
        %v1090 = vadd.f32 %v956, %v1089
        %v1091 = vpop.f32.mrb[0].mxu0
        %1092 = vmatprep.mubr.f32.mxu0 0.0
        %1093 = vmatmul.mubr.f32.gmra.mrb[0].mxu0 %v917
        %v1094 = vpop.f32.mrb[0].mxu0
        %v1095 = vadd.f32 %v956, %v1094
        %v1096 = vpop.f32.mrb[0].mxu0
        %1097 = vmatprep.mubr.f32.mxu0 0.0
        %1098 = vmatmul.mubr.f32.gmra.mrb[0].mxu0 %v918
        %v1099 = vpop.f32.mrb[0].mxu0
        %v1100 = vadd.f32 %v956, %v1099
        %v1101 = vpop.f32.mrb[0].mxu0
        %1102 = vmatprep.mubr.f32.mxu0 0.0
        %1103 = vmatmul.mubr.f32.gmra.mrb[0].mxu0 %v919
        %v1104 = vpop.f32.mrb[0].mxu0
        %v1105 = vadd.f32 %v956, %v1104
        %v1106 = vpop.f32.mrb[0].mxu0
        %1107 = vmatprep.mubr.f32.mxu0 0.0
        %1108 = vmatmul.mubr.f32.gmra.mrb[0].mxu0 %v920
        %v1109 = vpop.f32.mrb[0].mxu0
        %v1110 = vadd.f32 %v956, %v1109
        %v1111 = vpop.f32.mrb[0].mxu0
        %1112 = vmatprep.mubr.f32.mxu0 0.0
        %1113 = vmatmul.mubr.f32.gmra.mrb[0].mxu0 %v921
        %v1114 = vpop.f32.mrb[0].mxu0
        %v1115 = vadd.f32 %v956, %v1114
        %v1116 = vpop.f32.mrb[0].mxu0
        %1117 = vmatprep.mubr.f32.mxu0 0.0
        %1118 = vmatmul.mubr.f32.gmra.mrb[0].mxu0 %v922
        %v1119 = vpop.f32.mrb[0].mxu0
        %v1120 = vadd.f32 %v956, %v1119
        %v1121 = vpop.f32.mrb[0].mxu0
        %1122 = vmatprep.mubr.f32.mxu0 0.0
        %1123 = vmatmul.mubr.f32.gmra.mrb[0].mxu0 %v923
        %v1124 = vpop.f32.mrb[0].mxu0
        %v1125 = vadd.f32 %v956, %v1124
        %v1126 = vpop.f32.mrb[0].mxu0
        %1127 = vmatprep.mubr.f32.mxu0 0.0
        %1128 = vmatmul.mubr.f32.gmra.mrb[0].mxu0 %v924
        %v1129 = vpop.f32.mrb[0].mxu0
        %v1130 = vadd.f32 %v956, %v1129
        %v1131 = vpop.f32.mrb[0].mxu0
        %1132 = vmatprep.mubr.f32.mxu0 0.0
        %1133 = vmatmul.mubr.f32.gmra.mrb[0].mxu0 %v925
        %v1134 = vpop.f32.mrb[0].mxu0
        %v1135 = vadd.f32 %v956, %v1134
        %v1136 = vpop.f32.mrb[0].mxu0
        %1137 = vmatprep.mubr.f32.mxu0 0.0
        %1138 = vmatmul.mubr.f32.gmra.mrb[0].mxu0 %v926
        %v1139 = vpop.f32.mrb[0].mxu0
        %v1140 = vadd.f32 %v956, %v1139
        %v1141 = vpop.f32.mrb[0].mxu0
        %1142 = vmatprep.mubr.f32.mxu0 0.0
        %1143 = vmatmul.mubr.f32.gmra.mrb[0].mxu0 %v927
        %v1144 = vpop.f32.mrb[0].mxu0
        %v1145 = vadd.f32 %v956, %v1144
        %v1146 = vpop.f32.mrb[0].mxu0
        %1147 = vmatprep.mubr.f32.mxu0 0.0
        %1148 = vmatmul.mubr.f32.gmra.mrb[0].mxu0 %v928
        %v1149 = vpop.f32.mrb[0].mxu0
        %v1150 = vadd.f32 %v956, %v1149
        %v1151 = vpop.f32.mrb[0].mxu0
        %1152 = vmatprep.mubr.f32.mxu0 0.0
        %1153 = vmatmul.mubr.f32.gmra.mrb[0].mxu0 %v929
        %v1154 = vpop.f32.mrb[0].mxu0
        %v1155 = vadd.f32 %v956, %v1154
        %v1156 = vpop.f32.mrb[0].mxu0
        %1157 = vmatprep.mubr.f32.mxu0 0.0
        %1158 = vmatmul.mubr.f32.gmra.mrb[0].mxu0 %v930
        %v1159 = vpop.f32.mrb[0].mxu0
        %v1160 = vadd.f32 %v956, %v1159
        %v1161 = vpop.f32.mrb[0].mxu0
        %1162 = vmatprep.mubr.f32.mxu0 0.0
        %1163 = vmatmul.mubr.f32.gmra.mrb[0].mxu0 %v931
        %v1164 = vpop.f32.mrb[0].mxu0
        %v1165 = vadd.f32 %v956, %v1164
        %v1166 = vpop.f32.mrb[0].mxu0
        %1167 = vmatprep.mubr.f32.mxu0 0.0
        %1168 = vmatmul.mubr.f32.gmra.mrb[0].mxu0 %v932
        %v1169 = vpop.f32.mrb[0].mxu0
        %v1170 = vadd.f32 %v956, %v1169
        %v1171 = vpop.f32.mrb[0].mxu0
        %1172 = vmatprep.mubr.f32.mxu0 0.0
        %1173 = vmatmul.mubr.f32.gmra.mrb[0].mxu0 %v933
        %v1174 = vpop.f32.mrb[0].mxu0
        %v1175 = vadd.f32 %v956, %v1174
        %v1176 = vpop.f32.mrb[0].mxu0
        %1177 = vmatprep.mubr.f32.mxu0 0.0
        %1178 = vmatmul.mubr.f32.gmra.mrb[0].mxu0 %v934
        %v1179 = vpop.f32.mrb[0].mxu0
        %v1180 = vadd.f32 %v956, %v1179
        %v1181 = vpop.f32.mrb[0].mxu0
        %1182 = vdwg.mxu0
        %1183 = vst [vmem:[%s340] sm:$0xff] %v1025
        %1184 = vst [vmem:[%s340 + $0x8] sm:$0xff] %v1030
        %1185 = vst [vmem:[%s340 + $0x10] sm:$0xff] %v1035
        %1186 = vst [vmem:[%s340 + $0x18] sm:$0xff] %v1040
        %1187 = vst [vmem:[%s340 + $0x20] sm:$0xff] %v1045
        %1188 = vst [vmem:[%s340 + $0x28] sm:$0xff] %v1050
        %1189 = vst [vmem:[%s340 + $0x30] sm:$0xff] %v1055
        %1190 = vst [vmem:[%s340 + $0x38] sm:$0xff] %v1060
        %1191 = vst [vmem:[%s340 + $0x40] sm:$0xff] %v1065
        %1192 = vst [vmem:[%s340 + $0x48] sm:$0xff] %v1070
        %1193 = vst [vmem:[%s340 + $0x50] sm:$0xff] %v1075
        %1194 = vst [vmem:[%s340 + $0x58] sm:$0xff] %v1080
        %1195 = vst [vmem:[%s340 + $0x60] sm:$0xff] %v1085
        %1196 = vst [vmem:[%s340 + $0x68] sm:$0xff] %v1090
        %1197 = vst [vmem:[%s340 + $0x70] sm:$0xff] %v1095
        %1198 = vst [vmem:[%s340 + $0x78] sm:$0xff] %v1100
        %1199 = vst [vmem:[%s340 + $0x80] sm:$0xff] %v1105
        %1200 = vst [vmem:[%s340 + $0x88] sm:$0xff] %v1110
        %1201 = vst [vmem:[%s340 + $0x90] sm:$0xff] %v1115
        %1202 = vst [vmem:[%s340 + $0x98] sm:$0xff] %v1120
        %1203 = vst [vmem:[%s340 + $0xa0] sm:$0xff] %v1125
        %1204 = vst [vmem:[%s340 + $0xa8] sm:$0xff] %v1130
        %1205 = vst [vmem:[%s340 + $0xb0] sm:$0xff] %v1135
        %1206 = vst [vmem:[%s340 + $0xb8] sm:$0xff] %v1140
        %1207 = vst [vmem:[%s340 + $0xc0] sm:$0xff] %v1145
        %1208 = vst [vmem:[%s340 + $0xc8] sm:$0xff] %v1150
        %1209 = vst [vmem:[%s340 + $0xd0] sm:$0xff] %v1155
        %1210 = vst [vmem:[%s340 + $0xd8] sm:$0xff] %v1160
        %1211 = vst [vmem:[%s340 + $0xe0] sm:$0xff] %v1165
        %1212 = vst [vmem:[%s340 + $0xe8] sm:$0xff] %v1170
        %1213 = vst [vmem:[%s340 + $0xf0] sm:$0xff] %v1175
        %1214 = vst [vmem:[%s340 + $0xf8] sm:$0xff] %v1180
        %s1215 = sand.u32 %s186, 1
        %s1216 = scalar_lea.sflag [#allocation4], %s1215
        %s1217 = sand.u32 %s186, 1
        %s1218 = smul.addr %s1217, 256
        %s1219 = scalar_lea.vmem [#allocation10], %s1218
        // Predicated region
        $region65: #{tpu_custom_call.1} parent=47 // pred_check
          %p1220 = pneg %p196
        $region66: #{tpu_custom_call.1} parent=47 // pred_check_branch
          %1222 = sbr.rel (%p1220) target = $region68
        $region67: #{tpu_custom_call.1} parent=47 // pred_region
          %s1223 = smul.u32 32, %s26
          %s1225 = ssub.s32 4096, 4096
          %1226 = vsyncadd %s1216, %s1225
          %s1227 = smul.addr %s1223, 128
          %s1228 = scalar_lea.hbm %s7, %s1227
          %s1229 = sshll.u32 %s1219, 4
          %s1230 = int_to_ptr.vmem [resolvable:$true] %s1229
          %1235 = dma.vmem_to_hbm [thread:$0]  %s1230, 4096, %s1228, %s1216, 128, 128, 8
        $region68: #{tpu_custom_call.1} parent=47 // pred_fallthru
          _
      $region48: #{tpu_custom_call.1} parent=5 // pred_fallthru
        _
      %p1236 = scmp.le.s32.totalorder 2, %s21
      // Predicated region
      $region69: #{tpu_custom_call.1} parent=5 // pred_check
        %p1237 = pneg %p1236
      $region70: #{tpu_custom_call.1} parent=5 // pred_check_branch
        %1239 = sbr.rel (%p1237) target = $region72
      $region71: #{tpu_custom_call.1} parent=5 // pred_region
        %s1240 = ssub.s32 %s21, 2
        // Predicated region
        $region73: #{tpu_custom_call.1} parent=71 // pred_check
          %p1241 = pneg %p202
        $region74: #{tpu_custom_call.1} parent=71 // pred_check_branch
          %1243 = sbr.rel (%p1241) target = $region76
        $region75: #{tpu_custom_call.1} parent=71 // pred_region
          %s1244 = sand.u32 %s187, 1
          %s1245 = scalar_lea.sflag [#allocation4], %s1244
          %s1246 = sand.u32 %s187, 1
          %s1247 = smul.addr %s1246, 256
          %s1248 = scalar_lea.vmem [#allocation10], %s1247
          %1249 = dma.done %s1245, 4096
        $region76: #{tpu_custom_call.1} parent=71 // pred_fallthru
          _
      $region72: #{tpu_custom_call.1} parent=5 // pred_fallthru
        _
    $region6: #{tpu_custom_call.1} parent=1 // loop_footer
      %s25 = sadd.s32 1, %s21
    $region7: #{tpu_custom_call.1} parent=1 // loop_footer_branch
      %20 = sbr.rel target = $region3
    $region8: #{tpu_custom_call.1} parent=1 // loop_exit
      _
    %1250 = vsyncpa [#allocation3], 1
    %s1251 = scalar_lea.sflag [#allocation3], 1
    %1252 = vsyncpa %s1251, 1
    %1253 = vsyncpa [#allocation6], 1
    %1254 = vsyncpa [#allocation9], 1
    %1255 = vsyncpa [#allocation4], 1
    %s1256 = scalar_lea.sflag [#allocation4], 1
    %1257 = vsyncpa %s1256, 1

</llo_original>
